<compile_context>
chip_gen: v5e
topology: v5e:2x2
jax: 0.10.0
libtpu: 0.0.40
codegen_flags: <defaults>
</compile_context>

<pallas_src>
import functools

import jax
import jax.numpy as jnp
from jax.experimental import pallas as pl
from jax.experimental.pallas import tpu as pltpu


def _round_up(x, m):
    return (x + m - 1) // m * m


@functools.partial(
    jax.jit,
    static_argnames=("padding", "stride", "eps", "compute_dtype", "block_rows",
                     "output_layout", "out_dtype"),
)
def basic_conv2d(x_nchw, weight_oihw, gamma, beta, running_mean, running_var,
                 *, padding=1, stride=1, eps=1e-3,
                 compute_dtype=jnp.bfloat16, block_rows=512,
                 output_layout="NCHW", out_dtype=None):
    """Forward pass of BasicConv2d. Input is NCHW like PyTorch; output NCHW by default.

    Set output_layout="NHWC" (and out_dtype=jnp.bfloat16) in a full network to drop
    the boundary transpose / halve the write stream.
    """
    N, Cin, H, W = x_nchw.shape
    Cout, Cin_w, KH, KW = weight_oihw.shape
    assert Cin == Cin_w
    out_dtype = x_nchw.dtype if out_dtype is None else out_dtype

    Ho = (H + 2 * padding - KH) // stride + 1
    Wo = (W + 2 * padding - KW) // stride + 1
    Hp = H + 2 * padding
    Wp = W + 2 * padding
    Coutp = _round_up(Cout, 128)      # lane-dense output stores

    # --- row-block size: bh output rows per grid step, bh must divide Ho.
    bh = max(1, min(Ho, block_rows // max(Wo, 1)))
    while Ho % bh:
        bh -= 1
    if N * (Ho // bh) < 2 and Ho >= 2:     # give both v7x TensorCores work at batch 1
        bh = max(1, Ho // 2)
        while Ho % bh:
            bh -= 1
    HB = Ho // bh

    # --- boundary prep (single fused pass): NCHW -> NHWC, spatial zero-pad, cast.
    x_nhwc = jnp.transpose(x_nchw, (0, 2, 3, 1))
    x_pad = jnp.pad(
        x_nhwc, ((0, 0), (padding, padding), (padding, padding), (0, 0))
    ).astype(compute_dtype)

    # --- fold BN (inference) scale into the conv weights; keep only the shift.
    scale = gamma / jnp.sqrt(running_var + eps)                     # (Cout,)
    shift = (beta - running_mean * scale).astype(jnp.float32)       # (Cout,)
    w_taps = jnp.transpose(weight_oihw, (2, 3, 1, 0)).reshape(KH * KW, Cin, Cout)
    w_taps = (w_taps * scale[None, None, :]).astype(compute_dtype)
    w_taps = jnp.pad(w_taps, ((0, 0), (0, 0), (0, Coutp - Cout)))   # (KH*KW, Cin, Coutp)
    shift_p = jnp.pad(shift, (0, Coutp - Cout)).reshape(1, Coutp)   # (1, Coutp)

    def conv_bn_relu_kernel(x_ref, w_ref, shift_ref, o_ref):
        # x_ref:     (1, Hp, Wp, Cin)    padded NHWC image, resident across row blocks
        # w_ref:     (KH*KW, Cin, Coutp) BN-folded weights, VMEM-resident
        # shift_ref: (1, Coutp)          BN shift, VMEM-resident
        # o_ref:     (1, bh, Wo, Coutp)  output row block
        hb = pl.program_id(1)
        row0 = pl.multiple_of(hb * (bh * stride), bh * stride)
        acc = jnp.zeros((bh * Wo, Coutp), jnp.float32)
        for kh in range(KH):
            for kw in range(KW):
                if stride == 1:
                    patch = x_ref[0, pl.ds(row0 + kh, bh), pl.ds(kw, Wo), :]
                else:
                    patch = x_ref[0, pl.ds(row0 + kh, bh, stride),
                                  pl.ds(kw, Wo, stride), :]
                acc = acc + jnp.dot(patch.reshape(bh * Wo, Cin),
                                    w_ref[kh * KW + kw],
                                    preferred_element_type=jnp.float32)
        y = jnp.maximum(acc + shift_ref[...], 0.0)      # fused BN shift + ReLU
        o_ref[...] = y.reshape(1, bh, Wo, Coutp).astype(o_ref.dtype)

    # --- VMEM budget: double-buffered image + resident weight + out block + f32 acc.
    csz = jnp.dtype(compute_dtype).itemsize
    osz = jnp.dtype(out_dtype).itemsize
    vmem_est = (2 * Hp * Wp * max(Cin, 8) * csz
                + KH * KW * max(Cin, 8) * Coutp * csz
                + 2 * bh * Wo * Coutp * osz
                + bh * Wo * Coutp * 4 + Coutp * 4)
    vmem_limit = int(min(64 * 2 ** 20, max(32 * 2 ** 20, 2 * vmem_est)))

    out_pad = pl.pallas_call(
        conv_bn_relu_kernel,
        out_shape=jax.ShapeDtypeStruct((N, Ho, Wo, Coutp), out_dtype),
        grid_spec=pltpu.PrefetchScalarGridSpec(
            num_scalar_prefetch=0,
            grid=(N, HB),
            in_specs=[
                # full padded image; index only depends on n -> fetched once per image
                pl.BlockSpec((1, Hp, Wp, Cin), lambda n, hb: (n, 0, 0, 0)),
                # folded weight: constant index -> VMEM-resident
                pl.BlockSpec((KH * KW, Cin, Coutp), lambda n, hb: (0, 0, 0)),
                # BN shift: constant index -> VMEM-resident
                pl.BlockSpec((1, Coutp), lambda n, hb: (0, 0)),
            ],
            out_specs=pl.BlockSpec((1, bh, Wo, Coutp), lambda n, hb: (n, hb, 0, 0)),
        ),
        compiler_params=pltpu.CompilerParams(
            dimension_semantics=("parallel", "parallel"),
            vmem_limit_bytes=vmem_limit,
        ),
    )(x_pad, w_taps, shift_p)

    out = out_pad[..., :Cout]                 # drop lane-padding channels
    if output_layout == "NCHW":               # PyTorch parity (skip with "NHWC")
        out = jnp.transpose(out, (0, 3, 1, 2))
    return out


def _reference(x_nchw, weight_oihw, gamma, beta, running_mean, running_var,
               *, padding=1, stride=1, eps=1e-3):
    y = jax.lax.conv_general_dilated(
        x_nchw.astype(jnp.float32), weight_oihw.astype(jnp.float32),
        window_strides=(stride, stride),
        padding=[(padding, padding), (padding, padding)],
        dimension_numbers=("NCHW", "OIHW", "NCHW"))
    inv = 1.0 / jnp.sqrt(running_var + eps)
    y = (y - running_mean[None, :, None, None]) * (gamma * inv)[None, :, None, None] \
        + beta[None, :, None, None]
    return jnp.maximum(y, 0.0)


if __name__ == "__main__":
    key = jax.random.PRNGKey(0)
    k_x, k_w, k_g, k_b, k_m, k_v, k_w1 = jax.random.split(key, 7)

    N, Cin, H, W = 2, 4, 16, 16
    Cout, KH, KW = 8, 3, 3

    x = jax.random.normal(k_x, (N, Cin, H, W), dtype=jnp.float32)
    weight = jax.random.normal(k_w, (Cout, Cin, KH, KW), dtype=jnp.float32) * 0.1
    gamma = jax.random.uniform(k_g, (Cout,), minval=0.5, maxval=1.5)
    beta = jax.random.normal(k_b, (Cout,)) * 0.1
    running_mean = jax.random.normal(k_m, (Cout,)) * 0.1
    running_var = jax.random.uniform(k_v, (Cout,), minval=0.5, maxval=1.5)

    # --- 3x3 conv, padding=1 (zhangnet BasicConv2d(kernel_size=3, padding=1)).
    ref = _reference(x, weight, gamma, beta, running_mean, running_var,
                     padding=1, stride=1)

    out_f32 = jax.block_until_ready(
        basic_conv2d(x, weight, gamma, beta, running_mean, running_var,
                     padding=1, compute_dtype=jnp.float32))
    assert out_f32.shape == (N, Cout, H, W), out_f32.shape
    err_f32 = float(jnp.max(jnp.abs(out_f32 - ref)))
    assert jnp.allclose(out_f32, ref, atol=1e-3, rtol=1e-3), err_f32

    # Production path: bf16 MXU operands, f32 accumulation -> looser tolerance.
    out_bf16 = jax.block_until_ready(
        basic_conv2d(x, weight, gamma, beta, running_mean, running_var,
                     padding=1, compute_dtype=jnp.bfloat16))
    err_bf16 = float(jnp.max(jnp.abs(out_bf16 - ref)))
    assert jnp.allclose(out_bf16, ref, atol=5e-2, rtol=5e-2), err_bf16

    # --- 1x1 conv, padding=0 (the other BasicConv2d flavor in Inception-style nets).
    weight1 = jax.random.normal(k_w1, (Cout, Cin, 1, 1), dtype=jnp.float32) * 0.1
    ref1 = _reference(x, weight1, gamma, beta, running_mean, running_var,
                      padding=0, stride=1)
    out1 = jax.block_until_ready(
        basic_conv2d(x, weight1, gamma, beta, running_mean, running_var,
                     padding=0, compute_dtype=jnp.float32))
    err1 = float(jnp.max(jnp.abs(out1 - ref1)))
    assert jnp.allclose(out1, ref1, atol=1e-3, rtol=1e-3), err1

    print("KERNEL_OK")
</pallas_src>

<mosaic_0001>
module attributes {stable_mosaic.version = 11 : i64} {
  func.func @conv_bn_relu_kernel(%arg0: i32, %arg1: i32, %arg2: memref<1x18x18x4xf32, #tpu.memory_space<vmem>>, %arg3: memref<9x4x128xf32, #tpu.memory_space<vmem>>, %arg4: memref<1x128xf32, #tpu.memory_space<vmem>>, %arg5: memref<1x16x16x128xf32, #tpu.memory_space<vmem>>) attributes {dimension_semantics = [#tpu.dimension_semantics<parallel>, #tpu.dimension_semantics<parallel>], iteration_bounds = array<i64: 2, 1>, scalar_prefetch = 0 : i64, scratch_operands = 0 : i64, tpu.core_type = #tpu.core_type<tc>, window_params = [{transform_indices = @transform_0, window_bounds = array<i64: 1, 18, 18, 4>}, {pipeline_mode = #tpu.pipeline_mode<synchronous>, transform_indices = @transform_1, window_bounds = array<i64: 9, 4, 128>}, {pipeline_mode = #tpu.pipeline_mode<synchronous>, transform_indices = @transform_2, window_bounds = array<i64: 1, 128>}, {transform_indices = @transform_3, window_bounds = array<i64: 1, 16, 16, 128>}]} {
    %c16_i32 = arith.constant 16 : i32
    %0 = arith.muli %arg1, %c16_i32 : i32
    %1 = tpu.assume_multiple %0, 16 : i32
    %cst = arith.constant 0.000000e+00 : f32
    %2 = vector.broadcast %cst : f32 to vector<256x128xf32>
    %c0_i32 = arith.constant 0 : i32
    %3 = arith.addi %1, %c0_i32 : i32
    %c0 = arith.constant 0 : index
    %4 = arith.index_cast %3 : i32 to index
    %c0_0 = arith.constant 0 : index
    %c0_1 = arith.constant 0 : index
    %5 = vector.load %arg2[%c0, %4, %c0_0, %c0_1] : memref<1x18x18x4xf32, #tpu.memory_space<vmem>>, vector<1x16x16x4xf32>
    %6 = vector.shape_cast %5 : vector<1x16x16x4xf32> to vector<16x16x4xf32>
    %7 = vector.shape_cast %6 : vector<16x16x4xf32> to vector<256x4xf32>
    %c0_2 = arith.constant 0 : index
    %c0_3 = arith.constant 0 : index
    %c0_4 = arith.constant 0 : index
    %8 = vector.load %arg3[%c0_2, %c0_3, %c0_4] : memref<9x4x128xf32, #tpu.memory_space<vmem>>, vector<1x4x128xf32>
    %9 = vector.shape_cast %8 : vector<1x4x128xf32> to vector<4x128xf32>
    %cst_5 = arith.constant dense<0.000000e+00> : vector<256x128xf32>
    %10 = tpu.matmul %7, %9, %cst_5 {dimension_numbers = #tpu.dot_dimension_numbers<[1], [0], [0], [1], [0, 0, 1, 1], [], []>} : vector<256x4xf32>, vector<4x128xf32>, vector<256x128xf32> -> vector<256x128xf32>
    %11 = arith.addf %2, %10 : vector<256x128xf32>
    %c0_i32_6 = arith.constant 0 : i32
    %12 = arith.addi %1, %c0_i32_6 : i32
    %c0_7 = arith.constant 0 : index
    %13 = arith.index_cast %12 : i32 to index
    %c1 = arith.constant 1 : index
    %c0_8 = arith.constant 0 : index
    %14 = vector.load %arg2[%c0_7, %13, %c1, %c0_8] : memref<1x18x18x4xf32, #tpu.memory_space<vmem>>, vector<1x16x16x4xf32>
    %15 = vector.shape_cast %14 : vector<1x16x16x4xf32> to vector<16x16x4xf32>
    %16 = vector.shape_cast %15 : vector<16x16x4xf32> to vector<256x4xf32>
    %c1_9 = arith.constant 1 : index
    %c0_10 = arith.constant 0 : index
    %c0_11 = arith.constant 0 : index
    %17 = vector.load %arg3[%c1_9, %c0_10, %c0_11] : memref<9x4x128xf32, #tpu.memory_space<vmem>>, vector<1x4x128xf32>
    %18 = vector.shape_cast %17 : vector<1x4x128xf32> to vector<4x128xf32>
    %cst_12 = arith.constant dense<0.000000e+00> : vector<256x128xf32>
    %19 = tpu.matmul %16, %18, %cst_12 {dimension_numbers = #tpu.dot_dimension_numbers<[1], [0], [0], [1], [0, 0, 1, 1], [], []>} : vector<256x4xf32>, vector<4x128xf32>, vector<256x128xf32> -> vector<256x128xf32>
    %20 = arith.addf %11, %19 : vector<256x128xf32>
    %c0_i32_13 = arith.constant 0 : i32
    %21 = arith.addi %1, %c0_i32_13 : i32
    %c0_14 = arith.constant 0 : index
    %22 = arith.index_cast %21 : i32 to index
    %c2 = arith.constant 2 : index
    %c0_15 = arith.constant 0 : index
    %23 = vector.load %arg2[%c0_14, %22, %c2, %c0_15] : memref<1x18x18x4xf32, #tpu.memory_space<vmem>>, vector<1x16x16x4xf32>
    %24 = vector.shape_cast %23 : vector<1x16x16x4xf32> to vector<16x16x4xf32>
    %25 = vector.shape_cast %24 : vector<16x16x4xf32> to vector<256x4xf32>
    %c2_16 = arith.constant 2 : index
    %c0_17 = arith.constant 0 : index
    %c0_18 = arith.constant 0 : index
    %26 = vector.load %arg3[%c2_16, %c0_17, %c0_18] : memref<9x4x128xf32, #tpu.memory_space<vmem>>, vector<1x4x128xf32>
    %27 = vector.shape_cast %26 : vector<1x4x128xf32> to vector<4x128xf32>
    %cst_19 = arith.constant dense<0.000000e+00> : vector<256x128xf32>
    %28 = tpu.matmul %25, %27, %cst_19 {dimension_numbers = #tpu.dot_dimension_numbers<[1], [0], [0], [1], [0, 0, 1, 1], [], []>} : vector<256x4xf32>, vector<4x128xf32>, vector<256x128xf32> -> vector<256x128xf32>
    %29 = arith.addf %20, %28 : vector<256x128xf32>
    %c1_i32 = arith.constant 1 : i32
    %30 = arith.addi %1, %c1_i32 : i32
    %c0_20 = arith.constant 0 : index
    %31 = arith.index_cast %30 : i32 to index
    %c0_21 = arith.constant 0 : index
    %c0_22 = arith.constant 0 : index
    %32 = vector.load %arg2[%c0_20, %31, %c0_21, %c0_22] : memref<1x18x18x4xf32, #tpu.memory_space<vmem>>, vector<1x16x16x4xf32>
    %33 = vector.shape_cast %32 : vector<1x16x16x4xf32> to vector<16x16x4xf32>
    %34 = vector.shape_cast %33 : vector<16x16x4xf32> to vector<256x4xf32>
    %c3 = arith.constant 3 : index
    %c0_23 = arith.constant 0 : index
    %c0_24 = arith.constant 0 : index
    %35 = vector.load %arg3[%c3, %c0_23, %c0_24] : memref<9x4x128xf32, #tpu.memory_space<vmem>>, vector<1x4x128xf32>
    %36 = vector.shape_cast %35 : vector<1x4x128xf32> to vector<4x128xf32>
    %cst_25 = arith.constant dense<0.000000e+00> : vector<256x128xf32>
    %37 = tpu.matmul %34, %36, %cst_25 {dimension_numbers = #tpu.dot_dimension_numbers<[1], [0], [0], [1], [0, 0, 1, 1], [], []>} : vector<256x4xf32>, vector<4x128xf32>, vector<256x128xf32> -> vector<256x128xf32>
    %38 = arith.addf %29, %37 : vector<256x128xf32>
    %c1_i32_26 = arith.constant 1 : i32
    %39 = arith.addi %1, %c1_i32_26 : i32
    %c0_27 = arith.constant 0 : index
    %40 = arith.index_cast %39 : i32 to index
    %c1_28 = arith.constant 1 : index
    %c0_29 = arith.constant 0 : index
    %41 = vector.load %arg2[%c0_27, %40, %c1_28, %c0_29] : memref<1x18x18x4xf32, #tpu.memory_space<vmem>>, vector<1x16x16x4xf32>
    %42 = vector.shape_cast %41 : vector<1x16x16x4xf32> to vector<16x16x4xf32>
    %43 = vector.shape_cast %42 : vector<16x16x4xf32> to vector<256x4xf32>
    %c4 = arith.constant 4 : index
    %c0_30 = arith.constant 0 : index
    %c0_31 = arith.constant 0 : index
    %44 = vector.load %arg3[%c4, %c0_30, %c0_31] : memref<9x4x128xf32, #tpu.memory_space<vmem>>, vector<1x4x128xf32>
    %45 = vector.shape_cast %44 : vector<1x4x128xf32> to vector<4x128xf32>
    %cst_32 = arith.constant dense<0.000000e+00> : vector<256x128xf32>
    %46 = tpu.matmul %43, %45, %cst_32 {dimension_numbers = #tpu.dot_dimension_numbers<[1], [0], [0], [1], [0, 0, 1, 1], [], []>} : vector<256x4xf32>, vector<4x128xf32>, vector<256x128xf32> -> vector<256x128xf32>
    %47 = arith.addf %38, %46 : vector<256x128xf32>
    %c1_i32_33 = arith.constant 1 : i32
    %48 = arith.addi %1, %c1_i32_33 : i32
    %c0_34 = arith.constant 0 : index
    %49 = arith.index_cast %48 : i32 to index
    %c2_35 = arith.constant 2 : index
    %c0_36 = arith.constant 0 : index
    %50 = vector.load %arg2[%c0_34, %49, %c2_35, %c0_36] : memref<1x18x18x4xf32, #tpu.memory_space<vmem>>, vector<1x16x16x4xf32>
    %51 = vector.shape_cast %50 : vector<1x16x16x4xf32> to vector<16x16x4xf32>
    %52 = vector.shape_cast %51 : vector<16x16x4xf32> to vector<256x4xf32>
    %c5 = arith.constant 5 : index
    %c0_37 = arith.constant 0 : index
    %c0_38 = arith.constant 0 : index
    %53 = vector.load %arg3[%c5, %c0_37, %c0_38] : memref<9x4x128xf32, #tpu.memory_space<vmem>>, vector<1x4x128xf32>
    %54 = vector.shape_cast %53 : vector<1x4x128xf32> to vector<4x128xf32>
    %cst_39 = arith.constant dense<0.000000e+00> : vector<256x128xf32>
    %55 = tpu.matmul %52, %54, %cst_39 {dimension_numbers = #tpu.dot_dimension_numbers<[1], [0], [0], [1], [0, 0, 1, 1], [], []>} : vector<256x4xf32>, vector<4x128xf32>, vector<256x128xf32> -> vector<256x128xf32>
    %56 = arith.addf %47, %55 : vector<256x128xf32>
    %c2_i32 = arith.constant 2 : i32
    %57 = arith.addi %1, %c2_i32 : i32
    %c0_40 = arith.constant 0 : index
    %58 = arith.index_cast %57 : i32 to index
    %c0_41 = arith.constant 0 : index
    %c0_42 = arith.constant 0 : index
    %59 = vector.load %arg2[%c0_40, %58, %c0_41, %c0_42] : memref<1x18x18x4xf32, #tpu.memory_space<vmem>>, vector<1x16x16x4xf32>
    %60 = vector.shape_cast %59 : vector<1x16x16x4xf32> to vector<16x16x4xf32>
    %61 = vector.shape_cast %60 : vector<16x16x4xf32> to vector<256x4xf32>
    %c6 = arith.constant 6 : index
    %c0_43 = arith.constant 0 : index
    %c0_44 = arith.constant 0 : index
    %62 = vector.load %arg3[%c6, %c0_43, %c0_44] : memref<9x4x128xf32, #tpu.memory_space<vmem>>, vector<1x4x128xf32>
    %63 = vector.shape_cast %62 : vector<1x4x128xf32> to vector<4x128xf32>
    %cst_45 = arith.constant dense<0.000000e+00> : vector<256x128xf32>
    %64 = tpu.matmul %61, %63, %cst_45 {dimension_numbers = #tpu.dot_dimension_numbers<[1], [0], [0], [1], [0, 0, 1, 1], [], []>} : vector<256x4xf32>, vector<4x128xf32>, vector<256x128xf32> -> vector<256x128xf32>
    %65 = arith.addf %56, %64 : vector<256x128xf32>
    %c2_i32_46 = arith.constant 2 : i32
    %66 = arith.addi %1, %c2_i32_46 : i32
    %c0_47 = arith.constant 0 : index
    %67 = arith.index_cast %66 : i32 to index
    %c1_48 = arith.constant 1 : index
    %c0_49 = arith.constant 0 : index
    %68 = vector.load %arg2[%c0_47, %67, %c1_48, %c0_49] : memref<1x18x18x4xf32, #tpu.memory_space<vmem>>, vector<1x16x16x4xf32>
    %69 = vector.shape_cast %68 : vector<1x16x16x4xf32> to vector<16x16x4xf32>
    %70 = vector.shape_cast %69 : vector<16x16x4xf32> to vector<256x4xf32>
    %c7 = arith.constant 7 : index
    %c0_50 = arith.constant 0 : index
    %c0_51 = arith.constant 0 : index
    %71 = vector.load %arg3[%c7, %c0_50, %c0_51] : memref<9x4x128xf32, #tpu.memory_space<vmem>>, vector<1x4x128xf32>
    %72 = vector.shape_cast %71 : vector<1x4x128xf32> to vector<4x128xf32>
    %cst_52 = arith.constant dense<0.000000e+00> : vector<256x128xf32>
    %73 = tpu.matmul %70, %72, %cst_52 {dimension_numbers = #tpu.dot_dimension_numbers<[1], [0], [0], [1], [0, 0, 1, 1], [], []>} : vector<256x4xf32>, vector<4x128xf32>, vector<256x128xf32> -> vector<256x128xf32>
    %74 = arith.addf %65, %73 : vector<256x128xf32>
    %c2_i32_53 = arith.constant 2 : i32
    %75 = arith.addi %1, %c2_i32_53 : i32
    %c0_54 = arith.constant 0 : index
    %76 = arith.index_cast %75 : i32 to index
    %c2_55 = arith.constant 2 : index
    %c0_56 = arith.constant 0 : index
    %77 = vector.load %arg2[%c0_54, %76, %c2_55, %c0_56] : memref<1x18x18x4xf32, #tpu.memory_space<vmem>>, vector<1x16x16x4xf32>
    %78 = vector.shape_cast %77 : vector<1x16x16x4xf32> to vector<16x16x4xf32>
    %79 = vector.shape_cast %78 : vector<16x16x4xf32> to vector<256x4xf32>
    %c8 = arith.constant 8 : index
    %c0_57 = arith.constant 0 : index
    %c0_58 = arith.constant 0 : index
    %80 = vector.load %arg3[%c8, %c0_57, %c0_58] : memref<9x4x128xf32, #tpu.memory_space<vmem>>, vector<1x4x128xf32>
    %81 = vector.shape_cast %80 : vector<1x4x128xf32> to vector<4x128xf32>
    %cst_59 = arith.constant dense<0.000000e+00> : vector<256x128xf32>
    %82 = tpu.matmul %79, %81, %cst_59 {dimension_numbers = #tpu.dot_dimension_numbers<[1], [0], [0], [1], [0, 0, 1, 1], [], []>} : vector<256x4xf32>, vector<4x128xf32>, vector<256x128xf32> -> vector<256x128xf32>
    %83 = arith.addf %74, %82 : vector<256x128xf32>
    %c0_60 = arith.constant 0 : index
    %c0_61 = arith.constant 0 : index
    %84 = vector.load %arg4[%c0_60, %c0_61] : memref<1x128xf32, #tpu.memory_space<vmem>>, vector<1x128xf32>
    %85 = vector.broadcast %84 : vector<1x128xf32> to vector<256x128xf32>
    %86 = arith.addf %83, %85 : vector<256x128xf32>
    %cst_62 = arith.constant 0.000000e+00 : f32
    %87 = vector.broadcast %cst_62 : f32 to vector<256x128xf32>
    %88 = arith.maximumf %86, %87 : vector<256x128xf32>
    %89 = vector.shape_cast %88 : vector<256x128xf32> to vector<1x16x16x128xf32>
    %c0_63 = arith.constant 0 : index
    %c0_64 = arith.constant 0 : index
    %c0_65 = arith.constant 0 : index
    %c0_66 = arith.constant 0 : index
    %90 = vector.load %arg5[%c0_63, %c0_64, %c0_65, %c0_66] : memref<1x16x16x128xf32, #tpu.memory_space<vmem>>, vector<1x16x16x128xf32>
    tpu.vector_store %arg5[%c0_63, %c0_64, %c0_65, %c0_66], %89 {strides = array<i32>} : memref<1x16x16x128xf32, #tpu.memory_space<vmem>>, vector<1x16x16x128xf32>,
    return
  }
  func.func @transform_0(%arg0: i32, %arg1: i32) -> (i32, i32, i32, i32) {
    %c0_i32 = arith.constant 0 : i32
    %c0_i32_0 = arith.constant 0 : i32
    %c0_i32_1 = arith.constant 0 : i32
    %c0_i32_2 = arith.constant 0 : i32
    return %arg0, %c0_i32, %c0_i32_0, %c0_i32_1 : i32, i32, i32, i32
  }
  func.func @transform_1(%arg0: i32, %arg1: i32) -> (i32, i32, i32) {
    %c0_i32 = arith.constant 0 : i32
    %c0_i32_0 = arith.constant 0 : i32
    %c0_i32_1 = arith.constant 0 : i32
    %c0_i32_2 = arith.constant 0 : i32
    return %c0_i32, %c0_i32_0, %c0_i32_1 : i32, i32, i32
  }
  func.func @transform_2(%arg0: i32, %arg1: i32) -> (i32, i32) {
    %c0_i32 = arith.constant 0 : i32
    %c0_i32_0 = arith.constant 0 : i32
    %c0_i32_1 = arith.constant 0 : i32
    return %c0_i32, %c0_i32_0 : i32, i32
  }
  func.func @transform_3(%arg0: i32, %arg1: i32) -> (i32, i32, i32, i32) {
    %c0_i32 = arith.constant 0 : i32
    %c0_i32_0 = arith.constant 0 : i32
    %c0_i32_1 = arith.constant 0 : i32
    return %arg0, %arg1, %c0_i32, %c0_i32_0 : i32, i32, i32, i32
  }
}

</mosaic_0001>

<llo_original>
// kernel: basic_conv2d.1
$region0: #{basic_conv2d.1}
  #allocation0 [shape = 'u32[]', space=smem, size = 0x4, offset = 0x4, fixed_abs, tag = 'smem constant byte address 0x4 - core index']
  #allocation1 [shape = 'u32[72,128]{1,0:T(1,128)}', space=vmem, size = 0x9000, scoped, tag = 'internal scratch']
  %s0 = inlined_call_operand.vmem [shape: f32[2,18,18,4], index: 0, kind: input, shape index: {}]
  %s1 = inlined_call_operand.vmem [shape: f32[9,4,128], index: 1, kind: input, shape index: {}]
  %s2 = inlined_call_operand.vmem [shape: f32[1,128], index: 2, kind: input, shape index: {}]
  %s3 = inlined_call_operand.vmem [shape: f32[2,16,16,128], index: 3, kind: output, shape index: {}]
  %s4 = sld [smem:[#allocation0]]
  $region45: #{basic_conv2d.1} parent=0
    _
  %s6 = ssub.s32 1, %s4
  %s7 = scalar_select 0, %s6, %s4
  loop: start=0, step=1, limit=4
  $region2: #{basic_conv2d.1} parent=0 // loop_pre_header
    _
  $region3: #{basic_conv2d.1} parent=0 // loop_header
    %s9 = sphi 0, %s13
    %p10 = scmp.ge.s32.totalorder %s9, 4
    %s16 = sphi 0, %s28
    %s17 = sphi 0, %s24
    %s18 = sphi 0, %s16
    %s19 = sphi 0, %s17
    %s20 = sphi 0, %s18
    %s21 = sphi 0, %s19
    %s31 = sphi 0, %s33
    %s34 = sphi 0, %s31
    %s35 = sphi 0, %s34
    %s51 = sphi 0, %s35
    %s55 = sphi 0, %s55
    %s57 = sphi 0, %s55
    %s58 = sphi 0, %s57
    %s72 = sphi 0, %s58
    %s76 = sphi 0, %s76
    %s78 = sphi 0, %s76
    %s79 = sphi 0, %s78
    %s93 = sphi 0, %s79
    %s101 = sphi 0, %s103
    %s104 = sphi 0, %s101
    %s105 = sphi 0, %s104
    %s121 = sphi 0, %s105
  $region4: #{basic_conv2d.1} parent=0 // loop_header_branch
    %12 = sbr.rel (%p10) target = $region8
  $region5: #{basic_conv2d.1} parent=0 // loop_body
    %s14 = ssub.s32 %s9, 1
    %s15 = ssub.s32 %s9, 2
    %s22 = sadd.s32 1, %s17
    %p23 = scmp.ge.s32.totalorder %s22, 1
    %s24 = scalar_select %p23, 0, %s22
    %s25 = sadd.s32 1, %s16
    %s26 = scalar_select %p23, %s25, %s16
    %p27 = scmp.ge.s32.totalorder %s26, 2
    %s28 = scalar_select %p27, 0, %s26
    %s29 = ssub.s32 %s16, %s28
    %p30 = scmp.eq.s32.totalorder %s29, 0
    %s32 = sadd.s32 %s31, 1
    %s33 = scalar_select %p30, %s31, %s32
    %p36 = pneg %p30
    %p37 = scmp.eq.s32.totalorder %s9, 1
    %p38 = por %p36, %p37
    %p39 = scmp.ne.s32.totalorder %s31, %s34
    %p40 = scmp.eq.s32.totalorder %s9, 0
    %p41 = por %p39, %p40
    %p42 = scmp.ne.s32.totalorder %s31, %s34
    %p43 = scmp.eq.s32.totalorder %s14, 1
    %p44 = por %p42, %p43
    %p45 = scmp.ne.s32.totalorder %s34, %s35
    %p46 = scmp.eq.s32.totalorder %s14, 0
    %p47 = por %p45, %p46
    %p48 = scmp.ne.s32.totalorder %s34, %s35
    %p49 = scmp.eq.s32.totalorder %s15, 1
    %p50 = por %p48, %p49
    %p52 = scmp.ne.s32.totalorder %s35, %s51
    %p53 = scmp.eq.s32.totalorder %s15, 0
    %p54 = por %p52, %p53
    %s56 = sadd.s32 %s55, 1
    %p59 = scmp.eq.s32.totalorder %s9, 1
    %p60 = scmp.ne.s32.totalorder %s55, %s57
    %p61 = scmp.eq.s32.totalorder %s9, 0
    %p62 = por %p60, %p61
    %p63 = scmp.ne.s32.totalorder %s55, %s57
    %p64 = scmp.eq.s32.totalorder %s14, 1
    %p65 = por %p63, %p64
    %p66 = scmp.ne.s32.totalorder %s57, %s58
    %p67 = scmp.eq.s32.totalorder %s14, 0
    %p68 = por %p66, %p67
    %p69 = scmp.ne.s32.totalorder %s57, %s58
    %p70 = scmp.eq.s32.totalorder %s15, 1
    %p71 = por %p69, %p70
    %p73 = scmp.ne.s32.totalorder %s58, %s72
    %p74 = scmp.eq.s32.totalorder %s15, 0
    %p75 = por %p73, %p74
    %s77 = sadd.s32 %s76, 1
    %p80 = scmp.eq.s32.totalorder %s9, 1
    %p81 = scmp.ne.s32.totalorder %s76, %s78
    %p82 = scmp.eq.s32.totalorder %s9, 0
    %p83 = por %p81, %p82
    %p84 = scmp.ne.s32.totalorder %s76, %s78
    %p85 = scmp.eq.s32.totalorder %s14, 1
    %p86 = por %p84, %p85
    %p87 = scmp.ne.s32.totalorder %s78, %s79
    %p88 = scmp.eq.s32.totalorder %s14, 0
    %p89 = por %p87, %p88
    %p90 = scmp.ne.s32.totalorder %s78, %s79
    %p91 = scmp.eq.s32.totalorder %s15, 1
    %p92 = por %p90, %p91
    %p94 = scmp.ne.s32.totalorder %s79, %s93
    %p95 = scmp.eq.s32.totalorder %s15, 0
    %p96 = por %p94, %p95
    %s97 = ssub.s32 %s16, %s28
    %s98 = ssub.s32 %s17, %s24
    %s99 = sor.u32 %s97, %s98
    %p100 = scmp.eq.s32.totalorder %s99, 0
    %s102 = sadd.s32 %s101, 1
    %s103 = scalar_select %p100, %s101, %s102
    %p106 = pneg %p100
    %p107 = scmp.eq.s32.totalorder %s9, 1
    %p108 = por %p106, %p107
    %p109 = scmp.ne.s32.totalorder %s101, %s104
    %p110 = scmp.eq.s32.totalorder %s9, 0
    %p111 = por %p109, %p110
    %p112 = scmp.ne.s32.totalorder %s101, %s104
    %p113 = scmp.eq.s32.totalorder %s14, 1
    %p114 = por %p112, %p113
    %p115 = scmp.ne.s32.totalorder %s104, %s105
    %p116 = scmp.eq.s32.totalorder %s14, 0
    %p117 = por %p115, %p116
    %p118 = scmp.ne.s32.totalorder %s104, %s105
    %p119 = scmp.eq.s32.totalorder %s15, 1
    %p120 = por %p118, %p119
    %p122 = scmp.ne.s32.totalorder %s105, %s121
    %p123 = scmp.eq.s32.totalorder %s15, 0
    %p124 = por %p122, %p123
    %p125 = scmp.le.s32.totalorder 1, %s9
    %p126 = scmp.lt.s32.totalorder %s9, 3
    %p127 = pnand %p125, %p126
    %p128 = pneg %p127
    // Predicated region
    $region9: #{basic_conv2d.1} parent=5 // pred_check
      _
    $region10: #{basic_conv2d.1} parent=5 // pred_check_branch
      %130 = sbr.rel (%p127) target = $region12
    $region11: #{basic_conv2d.1} parent=5 // pred_region
      %s131 = ssub.s32 %s9, 1
      // Predicated region
      $region13: #{basic_conv2d.1} parent=11 // pred_check
        %p132 = pneg %p68
      $region14: #{basic_conv2d.1} parent=11 // pred_check_branch
        %134 = sbr.rel (%p132) target = $region16
      $region15: #{basic_conv2d.1} parent=11 // pred_region
        _
      $region16: #{basic_conv2d.1} parent=11 // pred_fallthru
        _
      // Predicated region
      $region17: #{basic_conv2d.1} parent=11 // pred_check
        %p135 = pneg %p89
      $region18: #{basic_conv2d.1} parent=11 // pred_check_branch
        %137 = sbr.rel (%p135) target = $region20
      $region19: #{basic_conv2d.1} parent=11 // pred_region
        _
      $region20: #{basic_conv2d.1} parent=11 // pred_fallthru
        _
    $region12: #{basic_conv2d.1} parent=5 // pred_fallthru
      _
    %p138 = scmp.lt.s32.totalorder %s9, 2
    // Predicated region
    $region21: #{basic_conv2d.1} parent=5 // pred_check
      %p139 = pneg %p138
    $region22: #{basic_conv2d.1} parent=5 // pred_check_branch
      %141 = sbr.rel (%p139) target = $region24
    $region23: #{basic_conv2d.1} parent=5 // pred_region
      // Predicated region
      $region25: #{basic_conv2d.1} parent=23 // pred_check
        %p142 = pneg %p41
      $region26: #{basic_conv2d.1} parent=23 // pred_check_branch
        %144 = sbr.rel (%p142) target = $region28
      $region27: #{basic_conv2d.1} parent=23 // pred_region
        %p145 = scmp.lt.s32.totalorder %s16, 1
        %s146 = scalar_select %p145, %s16, 1
        %s147 = smul.addr %s146, 54
        %s148 = smul.addr %s147, 8
        %s149 = scalar_lea.vmem %s0, %s148
      $region28: #{basic_conv2d.1} parent=23 // pred_fallthru
        _
    $region24: #{basic_conv2d.1} parent=5 // pred_fallthru
      _
    %p150 = scmp.le.s32.totalorder 1, %s9
    %p151 = scmp.lt.s32.totalorder %s9, 3
    %p152 = pnand %p150, %p151
    %p153 = pneg %p152
    // Predicated region
    $region29: #{basic_conv2d.1} parent=5 // pred_check
      _
    $region30: #{basic_conv2d.1} parent=5 // pred_check_branch
      %155 = sbr.rel (%p152) target = $region32
    $region31: #{basic_conv2d.1} parent=5 // pred_region
      %s156 = ssub.s32 %s9, 1
      %p157 = scmp.lt.s32.totalorder %s18, 1
      %s158 = scalar_select %p157, %s18, 1
      %s159 = smul.addr %s158, 54
      %s160 = smul.addr %s159, 8
      %s161 = scalar_lea.vmem %s0, %s160
      %p162 = pneg %p47
      %p163 = pneg %p44
      %p164 = pneg %p68
      %p165 = pneg %p65
      %p166 = pneg %p89
      %p167 = pneg %p86
      %p168 = pneg %p117
      %p169 = pneg %p114
      %s170 = smul.u32 16, %s19
      %p171 = scmp.lt.s32.totalorder %s18, 1
      %s172 = scalar_select %p171, %s18, 1
      %p173 = scmp.lt.s32.totalorder %s170, 15
      %s174 = scalar_select %p173, %s170, 15
      %s175 = smul.addr %s174, 2
      %s176 = smul.addr %s172, 32
      %s177 = sadd.s32 %s175, %s176
      %s178 = smul.addr %s177, 8
      %s179 = scalar_lea.vmem %s3, %s178
      %p180 = scmp.lt.s32.totalorder %s18, 1
      %s181 = scalar_select %p180, %s18, 1
      %s182 = smul.addr %s181, 54
      %s183 = smul.addr %s182, 8
      %s184 = scalar_lea.vmem %s0, %s183
      %s185 = smul.u32 16, %s19
      %p186 = scmp.lt.s32.totalorder %s18, 1
      %s187 = scalar_select %p186, %s18, 1
      %p188 = scmp.lt.s32.totalorder %s185, 15
      %s189 = scalar_select %p188, %s185, 15
      %s190 = smul.addr %s189, 2
      %s191 = smul.addr %s187, 32
      %s192 = sadd.s32 %s190, %s191
      %s193 = smul.addr %s192, 8
      %s194 = scalar_lea.vmem %s3, %s193
      %s195 = smul.u32 16, %s19
      %s196 = smul.u32 %s19, 16
      %s197 = smul.u32 %s196, 24
      %s198 = scalar_lea.vmem %s184, %s197
      %v199 = vld [vmem:[%s198] sm:$0xff]
      %v200 = vld [vmem:[%s198 + $0x8] sm:$0xff]
      %v201 = vld [vmem:[%s198 + $0x18] sm:$0xff]
      %v202 = vld [vmem:[%s198 + $0x20] sm:$0xff]
      %v203 = vld [vmem:[%s198 + $0x30] sm:$0xff]
      %v204 = vld [vmem:[%s198 + $0x38] sm:$0xff]
      %v205 = vld [vmem:[%s198 + $0x48] sm:$0xff]
      %v206 = vld [vmem:[%s198 + $0x50] sm:$0xff]
      %v207 = vld [vmem:[%s198 + $0x60] sm:$0xff]
      %v208 = vld [vmem:[%s198 + $0x68] sm:$0xff]
      %v209 = vld [vmem:[%s198 + $0x78] sm:$0xff]
      %v210 = vld [vmem:[%s198 + $0x80] sm:$0xff]
      %v211 = vld [vmem:[%s198 + $0x90] sm:$0xff]
      %v212 = vld [vmem:[%s198 + $0x98] sm:$0xff]
      %v213 = vld [vmem:[%s198 + $0xa8] sm:$0xff]
      %v214 = vld [vmem:[%s198 + $0xb0] sm:$0xff]
      %v215 = vld [vmem:[%s198 + $0xc0] sm:$0xff]
      %v216 = vld [vmem:[%s198 + $0xc8] sm:$0xff]
      %v217 = vld [vmem:[%s198 + $0xd8] sm:$0xff]
      %v218 = vld [vmem:[%s198 + $0xe0] sm:$0xff]
      %v219 = vld [vmem:[%s198 + $0xf0] sm:$0xff]
      %v220 = vld [vmem:[%s198 + $0xf8] sm:$0xff]
      %v221 = vld [vmem:[%s198 + $0x108] sm:$0xff]
      %v222 = vld [vmem:[%s198 + $0x110] sm:$0xff]
      %v223 = vld [vmem:[%s198 + $0x120] sm:$0xff]
      %v224 = vld [vmem:[%s198 + $0x128] sm:$0xff]
      %v225 = vld [vmem:[%s198 + $0x138] sm:$0xff]
      %v226 = vld [vmem:[%s198 + $0x140] sm:$0xff]
      %v227 = vld [vmem:[%s198 + $0x150] sm:$0xff]
      %v228 = vld [vmem:[%s198 + $0x158] sm:$0xff]
      %v229 = vld [vmem:[%s198 + $0x168] sm:$0xff]
      %v230 = vld [vmem:[%s198 + $0x170] sm:$0xff]
      %v231 = vld [vmem:[%s1] sm:$0xf]
      %v232 = vld [vmem:[%s198 + $0x1] sm:$0xff]
      %v233 = vld [vmem:[%s198 + $0x9] sm:$0xff]
      %v234 = vld [vmem:[%s198 + $0x19] sm:$0xff]
      %v235 = vld [vmem:[%s198 + $0x21] sm:$0xff]
      %v236 = vld [vmem:[%s198 + $0x31] sm:$0xff]
      %v237 = vld [vmem:[%s198 + $0x39] sm:$0xff]
      %v238 = vld [vmem:[%s198 + $0x49] sm:$0xff]
      %v239 = vld [vmem:[%s198 + $0x51] sm:$0xff]
      %v240 = vld [vmem:[%s198 + $0x61] sm:$0xff]
      %v241 = vld [vmem:[%s198 + $0x69] sm:$0xff]
      %v242 = vld [vmem:[%s198 + $0x79] sm:$0xff]
      %v243 = vld [vmem:[%s198 + $0x81] sm:$0xff]
      %v244 = vld [vmem:[%s198 + $0x91] sm:$0xff]
      %v245 = vld [vmem:[%s198 + $0x99] sm:$0xff]
      %v246 = vld [vmem:[%s198 + $0xa9] sm:$0xff]
      %v247 = vld [vmem:[%s198 + $0xb1] sm:$0xff]
      %v248 = vld [vmem:[%s198 + $0xc1] sm:$0xff]
      %v249 = vld [vmem:[%s198 + $0xc9] sm:$0xff]
      %v250 = vld [vmem:[%s198 + $0xd9] sm:$0xff]
      %v251 = vld [vmem:[%s198 + $0xe1] sm:$0xff]
      %v252 = vld [vmem:[%s198 + $0xf1] sm:$0xff]
      %v253 = vld [vmem:[%s198 + $0xf9] sm:$0xff]
      %v254 = vld [vmem:[%s198 + $0x109] sm:$0xff]
      %v255 = vld [vmem:[%s198 + $0x111] sm:$0xff]
      %v256 = vld [vmem:[%s198 + $0x121] sm:$0xff]
      %v257 = vld [vmem:[%s198 + $0x129] sm:$0xff]
      %v258 = vld [vmem:[%s198 + $0x139] sm:$0xff]
      %v259 = vld [vmem:[%s198 + $0x141] sm:$0xff]
      %v260 = vld [vmem:[%s198 + $0x151] sm:$0xff]
      %v261 = vld [vmem:[%s198 + $0x159] sm:$0xff]
      %v262 = vld [vmem:[%s198 + $0x169] sm:$0xff]
      %v263 = vld [vmem:[%s198 + $0x171] sm:$0xff]
      %s264 = scalar_lea.vmem %s1, 4
      %v265 = vld [vmem:[%s264] sm:$0xf]
      %vm266 = vcmask 31744
      %v268 = vsel %vm266, %v232, 0
      %v271 = vsel %vm266, %v233, 0
      %v274 = vsel %vm266, %v234, 0
      %v277 = vsel %vm266, %v235, 0
      %v280 = vsel %vm266, %v236, 0
      %v283 = vsel %vm266, %v237, 0
      %v286 = vsel %vm266, %v238, 0
      %v289 = vsel %vm266, %v239, 0
      %v292 = vsel %vm266, %v240, 0
      %v295 = vsel %vm266, %v241, 0
      %v298 = vsel %vm266, %v242, 0
      %v301 = vsel %vm266, %v243, 0
      %v304 = vsel %vm266, %v244, 0
      %v307 = vsel %vm266, %v245, 0
      %v310 = vsel %vm266, %v246, 0
      %v313 = vsel %vm266, %v247, 0
      %v316 = vsel %vm266, %v248, 0
      %v319 = vsel %vm266, %v249, 0
      %v322 = vsel %vm266, %v250, 0
      %v325 = vsel %vm266, %v251, 0
      %v328 = vsel %vm266, %v252, 0
      %v331 = vsel %vm266, %v253, 0
      %v334 = vsel %vm266, %v254, 0
      %v337 = vsel %vm266, %v255, 0
      %v340 = vsel %vm266, %v256, 0
      %v343 = vsel %vm266, %v257, 0
      %v346 = vsel %vm266, %v258, 0
      %v349 = vsel %vm266, %v259, 0
      %v352 = vsel %vm266, %v260, 0
      %v355 = vsel %vm266, %v261, 0
      %v358 = vsel %vm266, %v262, 0
      %v361 = vsel %vm266, %v263, 0
      %vm363 = vcmask 1043456
      %v365 = vsel %vm363, %v265, 0
      %367 = vmatpush.msra.mxu0 0.0
      %368 = vmatpush.msra.mxu0 0.0
      %369 = vmatpush.msra.mxu0 0.0
      %370 = vmatpush.msra.mxu0 0.0
      %371 = vmatpush.msra.mxu0 0.0
      %372 = vmatpush.msra.mxu0 0.0
      %373 = vmatpush.msra.mxu0 0.0
      %374 = vmatpush.msra.mxu0 0.0
      %375 = vmatpush.msra.mxu0 0.0
      %376 = vmatpush.msra.mxu0 0.0
      %377 = vmatpush.msra.mxu0 0.0
      %378 = vmatpush.msra.mxu0 0.0
      %379 = vmatpush.msra.mxu0 0.0
      %380 = vmatpush.msra.mxu0 0.0
      %381 = vmatpush.msra.mxu0 0.0
      %382 = vmatpush.msra.mxu0 %v365
      %383 = vmatmul.f32.gmra.mxu0 %v268
      %v384 = vpop.f32.mrf.mxu0
      %v385 = vadd.f32 0.0, %v384
      %386 = vmatmul.f32.gmra.mxu0 %v271
      %v387 = vpop.f32.mrf.mxu0
      %v388 = vadd.f32 0.0, %v387
      %389 = vmatmul.f32.gmra.mxu0 %v274
      %v390 = vpop.f32.mrf.mxu0
      %v391 = vadd.f32 0.0, %v390
      %392 = vmatmul.f32.gmra.mxu0 %v277
      %v393 = vpop.f32.mrf.mxu0
      %v394 = vadd.f32 0.0, %v393
      %395 = vmatmul.f32.gmra.mxu0 %v280
      %v396 = vpop.f32.mrf.mxu0
      %v397 = vadd.f32 0.0, %v396
      %398 = vmatmul.f32.gmra.mxu0 %v283
      %v399 = vpop.f32.mrf.mxu0
      %v400 = vadd.f32 0.0, %v399
      %401 = vmatmul.f32.gmra.mxu0 %v286
      %v402 = vpop.f32.mrf.mxu0
      %v403 = vadd.f32 0.0, %v402
      %404 = vmatmul.f32.gmra.mxu0 %v289
      %v405 = vpop.f32.mrf.mxu0
      %v406 = vadd.f32 0.0, %v405
      %407 = vmatmul.f32.gmra.mxu0 %v292
      %v408 = vpop.f32.mrf.mxu0
      %v409 = vadd.f32 0.0, %v408
      %410 = vmatmul.f32.gmra.mxu0 %v295
      %v411 = vpop.f32.mrf.mxu0
      %v412 = vadd.f32 0.0, %v411
      %413 = vmatmul.f32.gmra.mxu0 %v298
      %v414 = vpop.f32.mrf.mxu0
      %v415 = vadd.f32 0.0, %v414
      %416 = vmatmul.f32.gmra.mxu0 %v301
      %v417 = vpop.f32.mrf.mxu0
      %v418 = vadd.f32 0.0, %v417
      %419 = vmatmul.f32.gmra.mxu0 %v304
      %v420 = vpop.f32.mrf.mxu0
      %v421 = vadd.f32 0.0, %v420
      %422 = vmatmul.f32.gmra.mxu0 %v307
      %v423 = vpop.f32.mrf.mxu0
      %v424 = vadd.f32 0.0, %v423
      %425 = vmatmul.f32.gmra.mxu0 %v310
      %v426 = vpop.f32.mrf.mxu0
      %v427 = vadd.f32 0.0, %v426
      %428 = vmatmul.f32.gmra.mxu0 %v313
      %v429 = vpop.f32.mrf.mxu0
      %v430 = vadd.f32 0.0, %v429
      %431 = vmatmul.f32.gmra.mxu0 %v316
      %v432 = vpop.f32.mrf.mxu0
      %v433 = vadd.f32 0.0, %v432
      %434 = vmatmul.f32.gmra.mxu0 %v319
      %v435 = vpop.f32.mrf.mxu0
      %v436 = vadd.f32 0.0, %v435
      %437 = vmatmul.f32.gmra.mxu0 %v322
      %v438 = vpop.f32.mrf.mxu0
      %v439 = vadd.f32 0.0, %v438
      %440 = vmatmul.f32.gmra.mxu0 %v325
      %v441 = vpop.f32.mrf.mxu0
      %v442 = vadd.f32 0.0, %v441
      %443 = vmatmul.f32.gmra.mxu0 %v328
      %v444 = vpop.f32.mrf.mxu0
      %v445 = vadd.f32 0.0, %v444
      %446 = vmatmul.f32.gmra.mxu0 %v331
      %v447 = vpop.f32.mrf.mxu0
      %v448 = vadd.f32 0.0, %v447
      %449 = vmatmul.f32.gmra.mxu0 %v334
      %v450 = vpop.f32.mrf.mxu0
      %v451 = vadd.f32 0.0, %v450
      %452 = vmatmul.f32.gmra.mxu0 %v337
      %v453 = vpop.f32.mrf.mxu0
      %v454 = vadd.f32 0.0, %v453
      %455 = vmatmul.f32.gmra.mxu0 %v340
      %v456 = vpop.f32.mrf.mxu0
      %v457 = vadd.f32 0.0, %v456
      %458 = vmatmul.f32.gmra.mxu0 %v343
      %v459 = vpop.f32.mrf.mxu0
      %v460 = vadd.f32 0.0, %v459
      %461 = vmatmul.f32.gmra.mxu0 %v346
      %v462 = vpop.f32.mrf.mxu0
      %v463 = vadd.f32 0.0, %v462
      %464 = vmatmul.f32.gmra.mxu0 %v349
      %v465 = vpop.f32.mrf.mxu0
      %v466 = vadd.f32 0.0, %v465
      %467 = vmatmul.f32.gmra.mxu0 %v352
      %v468 = vpop.f32.mrf.mxu0
      %v469 = vadd.f32 0.0, %v468
      %470 = vmatmul.f32.gmra.mxu0 %v355
      %v471 = vpop.f32.mrf.mxu0
      %v472 = vadd.f32 0.0, %v471
      %473 = vmatmul.f32.gmra.mxu0 %v358
      %v474 = vpop.f32.mrf.mxu0
      %v475 = vadd.f32 0.0, %v474
      %476 = vmatmul.f32.gmra.mxu0 %v361
      %v477 = vpop.f32.mrf.mxu0
      %v478 = vadd.f32 0.0, %v477
      %479 = vdwg.mxu0
      %v481 = vsel %vm266, %v199, 0
      %v484 = vsel %vm266, %v200, 0
      %v487 = vsel %vm266, %v201, 0
      %v490 = vsel %vm266, %v202, 0
      %v493 = vsel %vm266, %v203, 0
      %v496 = vsel %vm266, %v204, 0
      %v499 = vsel %vm266, %v205, 0
      %v502 = vsel %vm266, %v206, 0
      %v505 = vsel %vm266, %v207, 0
      %v508 = vsel %vm266, %v208, 0
      %v511 = vsel %vm266, %v209, 0
      %v514 = vsel %vm266, %v210, 0
      %v517 = vsel %vm266, %v211, 0
      %v520 = vsel %vm266, %v212, 0
      %v523 = vsel %vm266, %v213, 0
      %v526 = vsel %vm266, %v214, 0
      %v529 = vsel %vm266, %v215, 0
      %v532 = vsel %vm266, %v216, 0
      %v535 = vsel %vm266, %v217, 0
      %v538 = vsel %vm266, %v218, 0
      %v541 = vsel %vm266, %v219, 0
      %v544 = vsel %vm266, %v220, 0
      %v547 = vsel %vm266, %v221, 0
      %v550 = vsel %vm266, %v222, 0
      %v553 = vsel %vm266, %v223, 0
      %v556 = vsel %vm266, %v224, 0
      %v559 = vsel %vm266, %v225, 0
      %v562 = vsel %vm266, %v226, 0
      %v565 = vsel %vm266, %v227, 0
      %v568 = vsel %vm266, %v228, 0
      %v571 = vsel %vm266, %v229, 0
      %v574 = vsel %vm266, %v230, 0
      %v577 = vsel %vm363, %v231, 0
      %579 = vmatpush.msra.mxu0 0.0
      %580 = vmatpush.msra.mxu0 0.0
      %581 = vmatpush.msra.mxu0 0.0
      %582 = vmatpush.msra.mxu0 0.0
      %583 = vmatpush.msra.mxu0 0.0
      %584 = vmatpush.msra.mxu0 0.0
      %585 = vmatpush.msra.mxu0 0.0
      %586 = vmatpush.msra.mxu0 0.0
      %587 = vmatpush.msra.mxu0 0.0
      %588 = vmatpush.msra.mxu0 0.0
      %589 = vmatpush.msra.mxu0 0.0
      %590 = vmatpush.msra.mxu0 0.0
      %591 = vmatpush.msra.mxu0 0.0
      %592 = vmatpush.msra.mxu0 0.0
      %593 = vmatpush.msra.mxu0 0.0
      %594 = vmatpush.msra.mxu0 %v577
      %595 = vmatmul.f32.gmra.mxu0 %v481
      %v596 = vpop.f32.mrf.mxu0
      %v597 = vadd.f32 %v385, %v596
      %598 = vmatmul.f32.gmra.mxu0 %v484
      %v599 = vpop.f32.mrf.mxu0
      %v600 = vadd.f32 %v388, %v599
      %601 = vmatmul.f32.gmra.mxu0 %v487
      %v602 = vpop.f32.mrf.mxu0
      %v603 = vadd.f32 %v391, %v602
      %604 = vmatmul.f32.gmra.mxu0 %v490
      %v605 = vpop.f32.mrf.mxu0
      %v606 = vadd.f32 %v394, %v605
      %607 = vmatmul.f32.gmra.mxu0 %v493
      %v608 = vpop.f32.mrf.mxu0
      %v609 = vadd.f32 %v397, %v608
      %610 = vmatmul.f32.gmra.mxu0 %v496
      %v611 = vpop.f32.mrf.mxu0
      %v612 = vadd.f32 %v400, %v611
      %613 = vmatmul.f32.gmra.mxu0 %v499
      %v614 = vpop.f32.mrf.mxu0
      %v615 = vadd.f32 %v403, %v614
      %616 = vmatmul.f32.gmra.mxu0 %v502
      %v617 = vpop.f32.mrf.mxu0
      %v618 = vadd.f32 %v406, %v617
      %619 = vmatmul.f32.gmra.mxu0 %v505
      %v620 = vpop.f32.mrf.mxu0
      %v621 = vadd.f32 %v409, %v620
      %622 = vmatmul.f32.gmra.mxu0 %v508
      %v623 = vpop.f32.mrf.mxu0
      %v624 = vadd.f32 %v412, %v623
      %625 = vmatmul.f32.gmra.mxu0 %v511
      %v626 = vpop.f32.mrf.mxu0
      %v627 = vadd.f32 %v415, %v626
      %628 = vmatmul.f32.gmra.mxu0 %v514
      %v629 = vpop.f32.mrf.mxu0
      %v630 = vadd.f32 %v418, %v629
      %631 = vmatmul.f32.gmra.mxu0 %v517
      %v632 = vpop.f32.mrf.mxu0
      %v633 = vadd.f32 %v421, %v632
      %634 = vmatmul.f32.gmra.mxu0 %v520
      %v635 = vpop.f32.mrf.mxu0
      %v636 = vadd.f32 %v424, %v635
      %637 = vmatmul.f32.gmra.mxu0 %v523
      %v638 = vpop.f32.mrf.mxu0
      %v639 = vadd.f32 %v427, %v638
      %640 = vmatmul.f32.gmra.mxu0 %v526
      %v641 = vpop.f32.mrf.mxu0
      %v642 = vadd.f32 %v430, %v641
      %643 = vmatmul.f32.gmra.mxu0 %v529
      %v644 = vpop.f32.mrf.mxu0
      %v645 = vadd.f32 %v433, %v644
      %646 = vmatmul.f32.gmra.mxu0 %v532
      %v647 = vpop.f32.mrf.mxu0
      %v648 = vadd.f32 %v436, %v647
      %649 = vmatmul.f32.gmra.mxu0 %v535
      %v650 = vpop.f32.mrf.mxu0
      %v651 = vadd.f32 %v439, %v650
      %652 = vmatmul.f32.gmra.mxu0 %v538
      %v653 = vpop.f32.mrf.mxu0
      %v654 = vadd.f32 %v442, %v653
      %655 = vmatmul.f32.gmra.mxu0 %v541
      %v656 = vpop.f32.mrf.mxu0
      %v657 = vadd.f32 %v445, %v656
      %658 = vmatmul.f32.gmra.mxu0 %v544
      %v659 = vpop.f32.mrf.mxu0
      %v660 = vadd.f32 %v448, %v659
      %661 = vmatmul.f32.gmra.mxu0 %v547
      %v662 = vpop.f32.mrf.mxu0
      %v663 = vadd.f32 %v451, %v662
      %664 = vmatmul.f32.gmra.mxu0 %v550
      %v665 = vpop.f32.mrf.mxu0
      %v666 = vadd.f32 %v454, %v665
      %667 = vmatmul.f32.gmra.mxu0 %v553
      %v668 = vpop.f32.mrf.mxu0
      %v669 = vadd.f32 %v457, %v668
      %670 = vmatmul.f32.gmra.mxu0 %v556
      %v671 = vpop.f32.mrf.mxu0
      %v672 = vadd.f32 %v460, %v671
      %673 = vmatmul.f32.gmra.mxu0 %v559
      %v674 = vpop.f32.mrf.mxu0
      %v675 = vadd.f32 %v463, %v674
      %676 = vmatmul.f32.gmra.mxu0 %v562
      %v677 = vpop.f32.mrf.mxu0
      %v678 = vadd.f32 %v466, %v677
      %679 = vmatmul.f32.gmra.mxu0 %v565
      %v680 = vpop.f32.mrf.mxu0
      %v681 = vadd.f32 %v469, %v680
      %682 = vmatmul.f32.gmra.mxu0 %v568
      %v683 = vpop.f32.mrf.mxu0
      %v684 = vadd.f32 %v472, %v683
      %685 = vmatmul.f32.gmra.mxu0 %v571
      %v686 = vpop.f32.mrf.mxu0
      %v687 = vadd.f32 %v475, %v686
      %688 = vmatmul.f32.gmra.mxu0 %v574
      %v689 = vpop.f32.mrf.mxu0
      %v690 = vadd.f32 %v478, %v689
      %691 = vdwg.mxu0
      %v692 = vld [vmem:[%s198 + $0x2] sm:$0xff]
      %v693 = vld [vmem:[%s198 + $0xa] sm:$0xff]
      %v694 = vld [vmem:[%s198 + $0x1a] sm:$0xff]
      %v695 = vld [vmem:[%s198 + $0x22] sm:$0xff]
      %v696 = vld [vmem:[%s198 + $0x32] sm:$0xff]
      %v697 = vld [vmem:[%s198 + $0x3a] sm:$0xff]
      %v698 = vld [vmem:[%s198 + $0x4a] sm:$0xff]
      %v699 = vld [vmem:[%s198 + $0x52] sm:$0xff]
      %v700 = vld [vmem:[%s198 + $0x62] sm:$0xff]
      %v701 = vld [vmem:[%s198 + $0x6a] sm:$0xff]
      %v702 = vld [vmem:[%s198 + $0x7a] sm:$0xff]
      %v703 = vld [vmem:[%s198 + $0x82] sm:$0xff]
      %v704 = vld [vmem:[%s198 + $0x92] sm:$0xff]
      %v705 = vld [vmem:[%s198 + $0x9a] sm:$0xff]
      %v706 = vld [vmem:[%s198 + $0xaa] sm:$0xff]
      %v707 = vld [vmem:[%s198 + $0xb2] sm:$0xff]
      %v708 = vld [vmem:[%s198 + $0xc2] sm:$0xff]
      %v709 = vld [vmem:[%s198 + $0xca] sm:$0xff]
      %v710 = vld [vmem:[%s198 + $0xda] sm:$0xff]
      %v711 = vld [vmem:[%s198 + $0xe2] sm:$0xff]
      %v712 = vld [vmem:[%s198 + $0xf2] sm:$0xff]
      %v713 = vld [vmem:[%s198 + $0xfa] sm:$0xff]
      %v714 = vld [vmem:[%s198 + $0x10a] sm:$0xff]
      %v715 = vld [vmem:[%s198 + $0x112] sm:$0xff]
      %v716 = vld [vmem:[%s198 + $0x122] sm:$0xff]
      %v717 = vld [vmem:[%s198 + $0x12a] sm:$0xff]
      %v718 = vld [vmem:[%s198 + $0x13a] sm:$0xff]
      %v719 = vld [vmem:[%s198 + $0x142] sm:$0xff]
      %v720 = vld [vmem:[%s198 + $0x152] sm:$0xff]
      %v721 = vld [vmem:[%s198 + $0x15a] sm:$0xff]
      %v722 = vld [vmem:[%s198 + $0x16a] sm:$0xff]
      %v723 = vld [vmem:[%s198 + $0x172] sm:$0xff]
      %s724 = scalar_lea.vmem %s1, 8
      %v725 = vld [vmem:[%s724] sm:$0xf]
      %v727 = vsel %vm266, %v692, 0
      %v730 = vsel %vm266, %v693, 0
      %v733 = vsel %vm266, %v694, 0
      %v736 = vsel %vm266, %v695, 0
      %v739 = vsel %vm266, %v696, 0
      %v742 = vsel %vm266, %v697, 0
      %v745 = vsel %vm266, %v698, 0
      %v748 = vsel %vm266, %v699, 0
      %v751 = vsel %vm266, %v700, 0
      %v754 = vsel %vm266, %v701, 0
      %v757 = vsel %vm266, %v702, 0
      %v760 = vsel %vm266, %v703, 0
      %v763 = vsel %vm266, %v704, 0
      %v766 = vsel %vm266, %v705, 0
      %v769 = vsel %vm266, %v706, 0
      %v772 = vsel %vm266, %v707, 0
      %v775 = vsel %vm266, %v708, 0
      %v778 = vsel %vm266, %v709, 0
      %v781 = vsel %vm266, %v710, 0
      %v784 = vsel %vm266, %v711, 0
      %v787 = vsel %vm266, %v712, 0
      %v790 = vsel %vm266, %v713, 0
      %v793 = vsel %vm266, %v714, 0
      %v796 = vsel %vm266, %v715, 0
      %v799 = vsel %vm266, %v716, 0
      %v802 = vsel %vm266, %v717, 0
      %v805 = vsel %vm266, %v718, 0
      %v808 = vsel %vm266, %v719, 0
      %v811 = vsel %vm266, %v720, 0
      %v814 = vsel %vm266, %v721, 0
      %v817 = vsel %vm266, %v722, 0
      %v820 = vsel %vm266, %v723, 0
      %v823 = vsel %vm363, %v725, 0
      %825 = vmatpush.msra.mxu0 0.0
      %826 = vmatpush.msra.mxu0 0.0
      %827 = vmatpush.msra.mxu0 0.0
      %828 = vmatpush.msra.mxu0 0.0
      %829 = vmatpush.msra.mxu0 0.0
      %830 = vmatpush.msra.mxu0 0.0
      %831 = vmatpush.msra.mxu0 0.0
      %832 = vmatpush.msra.mxu0 0.0
      %833 = vmatpush.msra.mxu0 0.0
      %834 = vmatpush.msra.mxu0 0.0
      %835 = vmatpush.msra.mxu0 0.0
      %836 = vmatpush.msra.mxu0 0.0
      %837 = vmatpush.msra.mxu0 0.0
      %838 = vmatpush.msra.mxu0 0.0
      %839 = vmatpush.msra.mxu0 0.0
      %840 = vmatpush.msra.mxu0 %v823
      %841 = vmatmul.f32.gmra.mxu0 %v727
      %v842 = vpop.f32.mrf.mxu0
      %v843 = vadd.f32 0.0, %v842
      %844 = vmatmul.f32.gmra.mxu0 %v730
      %v845 = vpop.f32.mrf.mxu0
      %v846 = vadd.f32 0.0, %v845
      %847 = vmatmul.f32.gmra.mxu0 %v733
      %v848 = vpop.f32.mrf.mxu0
      %v849 = vadd.f32 0.0, %v848
      %850 = vmatmul.f32.gmra.mxu0 %v736
      %v851 = vpop.f32.mrf.mxu0
      %v852 = vadd.f32 0.0, %v851
      %853 = vmatmul.f32.gmra.mxu0 %v739
      %v854 = vpop.f32.mrf.mxu0
      %v855 = vadd.f32 0.0, %v854
      %856 = vmatmul.f32.gmra.mxu0 %v742
      %v857 = vpop.f32.mrf.mxu0
      %v858 = vadd.f32 0.0, %v857
      %859 = vmatmul.f32.gmra.mxu0 %v745
      %v860 = vpop.f32.mrf.mxu0
      %v861 = vadd.f32 0.0, %v860
      %862 = vmatmul.f32.gmra.mxu0 %v748
      %v863 = vpop.f32.mrf.mxu0
      %v864 = vadd.f32 0.0, %v863
      %865 = vmatmul.f32.gmra.mxu0 %v751
      %v866 = vpop.f32.mrf.mxu0
      %v867 = vadd.f32 0.0, %v866
      %868 = vmatmul.f32.gmra.mxu0 %v754
      %v869 = vpop.f32.mrf.mxu0
      %v870 = vadd.f32 0.0, %v869
      %871 = vmatmul.f32.gmra.mxu0 %v757
      %v872 = vpop.f32.mrf.mxu0
      %v873 = vadd.f32 0.0, %v872
      %874 = vmatmul.f32.gmra.mxu0 %v760
      %v875 = vpop.f32.mrf.mxu0
      %v876 = vadd.f32 0.0, %v875
      %877 = vmatmul.f32.gmra.mxu0 %v763
      %v878 = vpop.f32.mrf.mxu0
      %v879 = vadd.f32 0.0, %v878
      %880 = vmatmul.f32.gmra.mxu0 %v766
      %v881 = vpop.f32.mrf.mxu0
      %v882 = vadd.f32 0.0, %v881
      %883 = vmatmul.f32.gmra.mxu0 %v769
      %v884 = vpop.f32.mrf.mxu0
      %v885 = vadd.f32 0.0, %v884
      %886 = vmatmul.f32.gmra.mxu0 %v772
      %v887 = vpop.f32.mrf.mxu0
      %v888 = vadd.f32 0.0, %v887
      %889 = vmatmul.f32.gmra.mxu0 %v775
      %v890 = vpop.f32.mrf.mxu0
      %v891 = vadd.f32 0.0, %v890
      %892 = vmatmul.f32.gmra.mxu0 %v778
      %v893 = vpop.f32.mrf.mxu0
      %v894 = vadd.f32 0.0, %v893
      %895 = vmatmul.f32.gmra.mxu0 %v781
      %v896 = vpop.f32.mrf.mxu0
      %v897 = vadd.f32 0.0, %v896
      %898 = vmatmul.f32.gmra.mxu0 %v784
      %v899 = vpop.f32.mrf.mxu0
      %v900 = vadd.f32 0.0, %v899
      %901 = vmatmul.f32.gmra.mxu0 %v787
      %v902 = vpop.f32.mrf.mxu0
      %v903 = vadd.f32 0.0, %v902
      %904 = vmatmul.f32.gmra.mxu0 %v790
      %v905 = vpop.f32.mrf.mxu0
      %v906 = vadd.f32 0.0, %v905
      %907 = vmatmul.f32.gmra.mxu0 %v793
      %v908 = vpop.f32.mrf.mxu0
      %v909 = vadd.f32 0.0, %v908
      %910 = vmatmul.f32.gmra.mxu0 %v796
      %v911 = vpop.f32.mrf.mxu0
      %v912 = vadd.f32 0.0, %v911
      %913 = vmatmul.f32.gmra.mxu0 %v799
      %v914 = vpop.f32.mrf.mxu0
      %v915 = vadd.f32 0.0, %v914
      %916 = vmatmul.f32.gmra.mxu0 %v802
      %v917 = vpop.f32.mrf.mxu0
      %v918 = vadd.f32 0.0, %v917
      %919 = vmatmul.f32.gmra.mxu0 %v805
      %v920 = vpop.f32.mrf.mxu0
      %v921 = vadd.f32 0.0, %v920
      %922 = vmatmul.f32.gmra.mxu0 %v808
      %v923 = vpop.f32.mrf.mxu0
      %v924 = vadd.f32 0.0, %v923
      %925 = vmatmul.f32.gmra.mxu0 %v811
      %v926 = vpop.f32.mrf.mxu0
      %v927 = vadd.f32 0.0, %v926
      %928 = vmatmul.f32.gmra.mxu0 %v814
      %v929 = vpop.f32.mrf.mxu0
      %v930 = vadd.f32 0.0, %v929
      %931 = vmatmul.f32.gmra.mxu0 %v817
      %v932 = vpop.f32.mrf.mxu0
      %v933 = vadd.f32 0.0, %v932
      %934 = vmatmul.f32.gmra.mxu0 %v820
      %v935 = vpop.f32.mrf.mxu0
      %v936 = vadd.f32 0.0, %v935
      %937 = vdwg.mxu0
      %v938 = vadd.f32 %v597, %v843
      %v939 = vadd.f32 %v600, %v846
      %v940 = vadd.f32 %v603, %v849
      %v941 = vadd.f32 %v606, %v852
      %v942 = vadd.f32 %v609, %v855
      %v943 = vadd.f32 %v612, %v858
      %v944 = vadd.f32 %v615, %v861
      %v945 = vadd.f32 %v618, %v864
      %v946 = vadd.f32 %v621, %v867
      %v947 = vadd.f32 %v624, %v870
      %v948 = vadd.f32 %v627, %v873
      %v949 = vadd.f32 %v630, %v876
      %v950 = vadd.f32 %v633, %v879
      %v951 = vadd.f32 %v636, %v882
      %v952 = vadd.f32 %v639, %v885
      %v953 = vadd.f32 %v642, %v888
      %v954 = vadd.f32 %v645, %v891
      %v955 = vadd.f32 %v648, %v894
      %v956 = vadd.f32 %v651, %v897
      %v957 = vadd.f32 %v654, %v900
      %v958 = vadd.f32 %v657, %v903
      %v959 = vadd.f32 %v660, %v906
      %v960 = vadd.f32 %v663, %v909
      %v961 = vadd.f32 %v666, %v912
      %v962 = vadd.f32 %v669, %v915
      %v963 = vadd.f32 %v672, %v918
      %v964 = vadd.f32 %v675, %v921
      %v965 = vadd.f32 %v678, %v924
      %v966 = vadd.f32 %v681, %v927
      %v967 = vadd.f32 %v684, %v930
      %v968 = vadd.f32 %v687, %v933
      %v969 = vadd.f32 %v690, %v936
      %s970 = sadd.s32 %s196, 1
      %s971 = smul.u32 %s970, 24
      %s972 = scalar_lea.vmem %s184, %s971
      %v973 = vld [vmem:[%s972] sm:$0xff]
      %v974 = vld [vmem:[%s972 + $0x8] sm:$0xff]
      %v975 = vld [vmem:[%s972 + $0x18] sm:$0xff]
      %v976 = vld [vmem:[%s972 + $0x20] sm:$0xff]
      %v977 = vld [vmem:[%s972 + $0x30] sm:$0xff]
      %v978 = vld [vmem:[%s972 + $0x38] sm:$0xff]
      %v979 = vld [vmem:[%s972 + $0x48] sm:$0xff]
      %v980 = vld [vmem:[%s972 + $0x50] sm:$0xff]
      %v981 = vld [vmem:[%s972 + $0x60] sm:$0xff]
      %v982 = vld [vmem:[%s972 + $0x68] sm:$0xff]
      %v983 = vld [vmem:[%s972 + $0x78] sm:$0xff]
      %v984 = vld [vmem:[%s972 + $0x80] sm:$0xff]
      %v985 = vld [vmem:[%s972 + $0x90] sm:$0xff]
      %v986 = vld [vmem:[%s972 + $0x98] sm:$0xff]
      %v987 = vld [vmem:[%s972 + $0xa8] sm:$0xff]
      %v988 = vld [vmem:[%s972 + $0xb0] sm:$0xff]
      %v989 = vld [vmem:[%s972 + $0xc0] sm:$0xff]
      %v990 = vld [vmem:[%s972 + $0xc8] sm:$0xff]
      %v991 = vld [vmem:[%s972 + $0xd8] sm:$0xff]
      %v992 = vld [vmem:[%s972 + $0xe0] sm:$0xff]
      %v993 = vld [vmem:[%s972 + $0xf0] sm:$0xff]
      %v994 = vld [vmem:[%s972 + $0xf8] sm:$0xff]
      %v995 = vld [vmem:[%s972 + $0x108] sm:$0xff]
      %v996 = vld [vmem:[%s972 + $0x110] sm:$0xff]
      %v997 = vld [vmem:[%s972 + $0x120] sm:$0xff]
      %v998 = vld [vmem:[%s972 + $0x128] sm:$0xff]
      %v999 = vld [vmem:[%s972 + $0x138] sm:$0xff]
      %v1000 = vld [vmem:[%s972 + $0x140] sm:$0xff]
      %v1001 = vld [vmem:[%s972 + $0x150] sm:$0xff]
      %v1002 = vld [vmem:[%s972 + $0x158] sm:$0xff]
      %v1003 = vld [vmem:[%s972 + $0x168] sm:$0xff]
      %v1004 = vld [vmem:[%s972 + $0x170] sm:$0xff]
      %s1005 = scalar_lea.vmem %s1, 12
      %v1006 = vld [vmem:[%s1005] sm:$0xf]
      %v1008 = vsel %vm266, %v973, 0
      %v1011 = vsel %vm266, %v974, 0
      %v1014 = vsel %vm266, %v975, 0
      %v1017 = vsel %vm266, %v976, 0
      %v1020 = vsel %vm266, %v977, 0
      %v1023 = vsel %vm266, %v978, 0
      %v1026 = vsel %vm266, %v979, 0
      %v1029 = vsel %vm266, %v980, 0
      %v1032 = vsel %vm266, %v981, 0
      %v1035 = vsel %vm266, %v982, 0
      %v1038 = vsel %vm266, %v983, 0
      %v1041 = vsel %vm266, %v984, 0
      %v1044 = vsel %vm266, %v985, 0
      %v1047 = vsel %vm266, %v986, 0
      %v1050 = vsel %vm266, %v987, 0
      %v1053 = vsel %vm266, %v988, 0
      %v1056 = vsel %vm266, %v989, 0
      %v1059 = vsel %vm266, %v990, 0
      %v1062 = vsel %vm266, %v991, 0
      %v1065 = vsel %vm266, %v992, 0
      %v1068 = vsel %vm266, %v993, 0
      %v1071 = vsel %vm266, %v994, 0
      %v1074 = vsel %vm266, %v995, 0
      %v1077 = vsel %vm266, %v996, 0
      %v1080 = vsel %vm266, %v997, 0
      %v1083 = vsel %vm266, %v998, 0
      %v1086 = vsel %vm266, %v999, 0
      %v1089 = vsel %vm266, %v1000, 0
      %v1092 = vsel %vm266, %v1001, 0
      %v1095 = vsel %vm266, %v1002, 0
      %v1098 = vsel %vm266, %v1003, 0
      %v1101 = vsel %vm266, %v1004, 0
      %v1104 = vsel %vm363, %v1006, 0
      %1106 = vmatpush.msra.mxu0 0.0
      %1107 = vmatpush.msra.mxu0 0.0
      %1108 = vmatpush.msra.mxu0 0.0
      %1109 = vmatpush.msra.mxu0 0.0
      %1110 = vmatpush.msra.mxu0 0.0
      %1111 = vmatpush.msra.mxu0 0.0
      %1112 = vmatpush.msra.mxu0 0.0
      %1113 = vmatpush.msra.mxu0 0.0
      %1114 = vmatpush.msra.mxu0 0.0
      %1115 = vmatpush.msra.mxu0 0.0
      %1116 = vmatpush.msra.mxu0 0.0
      %1117 = vmatpush.msra.mxu0 0.0
      %1118 = vmatpush.msra.mxu0 0.0
      %1119 = vmatpush.msra.mxu0 0.0
      %1120 = vmatpush.msra.mxu0 0.0
      %1121 = vmatpush.msra.mxu0 %v1104
      %1122 = vmatmul.f32.gmra.mxu0 %v1008
      %v1123 = vpop.f32.mrf.mxu0
      %v1124 = vadd.f32 0.0, %v1123
      %1125 = vmatmul.f32.gmra.mxu0 %v1011
      %v1126 = vpop.f32.mrf.mxu0
      %v1127 = vadd.f32 0.0, %v1126
      %1128 = vmatmul.f32.gmra.mxu0 %v1014
      %v1129 = vpop.f32.mrf.mxu0
      %v1130 = vadd.f32 0.0, %v1129
      %1131 = vmatmul.f32.gmra.mxu0 %v1017
      %v1132 = vpop.f32.mrf.mxu0
      %v1133 = vadd.f32 0.0, %v1132
      %1134 = vmatmul.f32.gmra.mxu0 %v1020
      %v1135 = vpop.f32.mrf.mxu0
      %v1136 = vadd.f32 0.0, %v1135
      %1137 = vmatmul.f32.gmra.mxu0 %v1023
      %v1138 = vpop.f32.mrf.mxu0
      %v1139 = vadd.f32 0.0, %v1138
      %1140 = vmatmul.f32.gmra.mxu0 %v1026
      %v1141 = vpop.f32.mrf.mxu0
      %v1142 = vadd.f32 0.0, %v1141
      %1143 = vmatmul.f32.gmra.mxu0 %v1029
      %v1144 = vpop.f32.mrf.mxu0
      %v1145 = vadd.f32 0.0, %v1144
      %1146 = vmatmul.f32.gmra.mxu0 %v1032
      %v1147 = vpop.f32.mrf.mxu0
      %v1148 = vadd.f32 0.0, %v1147
      %1149 = vmatmul.f32.gmra.mxu0 %v1035
      %v1150 = vpop.f32.mrf.mxu0
      %v1151 = vadd.f32 0.0, %v1150
      %1152 = vmatmul.f32.gmra.mxu0 %v1038
      %v1153 = vpop.f32.mrf.mxu0
      %v1154 = vadd.f32 0.0, %v1153
      %1155 = vmatmul.f32.gmra.mxu0 %v1041
      %v1156 = vpop.f32.mrf.mxu0
      %v1157 = vadd.f32 0.0, %v1156
      %1158 = vmatmul.f32.gmra.mxu0 %v1044
      %v1159 = vpop.f32.mrf.mxu0
      %v1160 = vadd.f32 0.0, %v1159
      %1161 = vmatmul.f32.gmra.mxu0 %v1047
      %v1162 = vpop.f32.mrf.mxu0
      %v1163 = vadd.f32 0.0, %v1162
      %1164 = vmatmul.f32.gmra.mxu0 %v1050
      %v1165 = vpop.f32.mrf.mxu0
      %v1166 = vadd.f32 0.0, %v1165
      %1167 = vmatmul.f32.gmra.mxu0 %v1053
      %v1168 = vpop.f32.mrf.mxu0
      %v1169 = vadd.f32 0.0, %v1168
      %1170 = vmatmul.f32.gmra.mxu0 %v1056
      %v1171 = vpop.f32.mrf.mxu0
      %v1172 = vadd.f32 0.0, %v1171
      %1173 = vmatmul.f32.gmra.mxu0 %v1059
      %v1174 = vpop.f32.mrf.mxu0
      %v1175 = vadd.f32 0.0, %v1174
      %1176 = vmatmul.f32.gmra.mxu0 %v1062
      %v1177 = vpop.f32.mrf.mxu0
      %v1178 = vadd.f32 0.0, %v1177
      %1179 = vmatmul.f32.gmra.mxu0 %v1065
      %v1180 = vpop.f32.mrf.mxu0
      %v1181 = vadd.f32 0.0, %v1180
      %1182 = vmatmul.f32.gmra.mxu0 %v1068
      %v1183 = vpop.f32.mrf.mxu0
      %v1184 = vadd.f32 0.0, %v1183
      %1185 = vmatmul.f32.gmra.mxu0 %v1071
      %v1186 = vpop.f32.mrf.mxu0
      %v1187 = vadd.f32 0.0, %v1186
      %1188 = vmatmul.f32.gmra.mxu0 %v1074
      %v1189 = vpop.f32.mrf.mxu0
      %v1190 = vadd.f32 0.0, %v1189
      %1191 = vmatmul.f32.gmra.mxu0 %v1077
      %v1192 = vpop.f32.mrf.mxu0
      %v1193 = vadd.f32 0.0, %v1192
      %1194 = vmatmul.f32.gmra.mxu0 %v1080
      %v1195 = vpop.f32.mrf.mxu0
      %v1196 = vadd.f32 0.0, %v1195
      %1197 = vmatmul.f32.gmra.mxu0 %v1083
      %v1198 = vpop.f32.mrf.mxu0
      %v1199 = vadd.f32 0.0, %v1198
      %1200 = vmatmul.f32.gmra.mxu0 %v1086
      %v1201 = vpop.f32.mrf.mxu0
      %v1202 = vadd.f32 0.0, %v1201
      %1203 = vmatmul.f32.gmra.mxu0 %v1089
      %v1204 = vpop.f32.mrf.mxu0
      %v1205 = vadd.f32 0.0, %v1204
      %1206 = vmatmul.f32.gmra.mxu0 %v1092
      %v1207 = vpop.f32.mrf.mxu0
      %v1208 = vadd.f32 0.0, %v1207
      %1209 = vmatmul.f32.gmra.mxu0 %v1095
      %v1210 = vpop.f32.mrf.mxu0
      %v1211 = vadd.f32 0.0, %v1210
      %1212 = vmatmul.f32.gmra.mxu0 %v1098
      %v1213 = vpop.f32.mrf.mxu0
      %v1214 = vadd.f32 0.0, %v1213
      %1215 = vmatmul.f32.gmra.mxu0 %v1101
      %v1216 = vpop.f32.mrf.mxu0
      %v1217 = vadd.f32 0.0, %v1216
      %1218 = vdwg.mxu0
      %v1219 = vadd.f32 %v938, %v1124
      %v1220 = vadd.f32 %v939, %v1127
      %v1221 = vadd.f32 %v940, %v1130
      %v1222 = vadd.f32 %v941, %v1133
      %v1223 = vadd.f32 %v942, %v1136
      %v1224 = vadd.f32 %v943, %v1139
      %v1225 = vadd.f32 %v944, %v1142
      %v1226 = vadd.f32 %v945, %v1145
      %v1227 = vadd.f32 %v946, %v1148
      %v1228 = vadd.f32 %v947, %v1151
      %v1229 = vadd.f32 %v948, %v1154
      %v1230 = vadd.f32 %v949, %v1157
      %v1231 = vadd.f32 %v950, %v1160
      %v1232 = vadd.f32 %v951, %v1163
      %v1233 = vadd.f32 %v952, %v1166
      %v1234 = vadd.f32 %v953, %v1169
      %v1235 = vadd.f32 %v954, %v1172
      %v1236 = vadd.f32 %v955, %v1175
      %v1237 = vadd.f32 %v956, %v1178
      %v1238 = vadd.f32 %v957, %v1181
      %v1239 = vadd.f32 %v958, %v1184
      %v1240 = vadd.f32 %v959, %v1187
      %v1241 = vadd.f32 %v960, %v1190
      %v1242 = vadd.f32 %v961, %v1193
      %v1243 = vadd.f32 %v962, %v1196
      %v1244 = vadd.f32 %v963, %v1199
      %v1245 = vadd.f32 %v964, %v1202
      %v1246 = vadd.f32 %v965, %v1205
      %v1247 = vadd.f32 %v966, %v1208
      %v1248 = vadd.f32 %v967, %v1211
      %v1249 = vadd.f32 %v968, %v1214
      %v1250 = vadd.f32 %v969, %v1217
      %v1251 = vld [vmem:[%s972 + $0x1] sm:$0xff]
      %v1252 = vld [vmem:[%s972 + $0x9] sm:$0xff]
      %v1253 = vld [vmem:[%s972 + $0x19] sm:$0xff]
      %v1254 = vld [vmem:[%s972 + $0x21] sm:$0xff]
      %v1255 = vld [vmem:[%s972 + $0x31] sm:$0xff]
      %v1256 = vld [vmem:[%s972 + $0x39] sm:$0xff]
      %v1257 = vld [vmem:[%s972 + $0x49] sm:$0xff]
      %v1258 = vld [vmem:[%s972 + $0x51] sm:$0xff]
      %v1259 = vld [vmem:[%s972 + $0x61] sm:$0xff]
      %v1260 = vld [vmem:[%s972 + $0x69] sm:$0xff]
      %v1261 = vld [vmem:[%s972 + $0x79] sm:$0xff]
      %v1262 = vld [vmem:[%s972 + $0x81] sm:$0xff]
      %v1263 = vld [vmem:[%s972 + $0x91] sm:$0xff]
      %v1264 = vld [vmem:[%s972 + $0x99] sm:$0xff]
      %v1265 = vld [vmem:[%s972 + $0xa9] sm:$0xff]
      %v1266 = vld [vmem:[%s972 + $0xb1] sm:$0xff]
      %v1267 = vld [vmem:[%s972 + $0xc1] sm:$0xff]
      %v1268 = vld [vmem:[%s972 + $0xc9] sm:$0xff]
      %v1269 = vld [vmem:[%s972 + $0xd9] sm:$0xff]
      %v1270 = vld [vmem:[%s972 + $0xe1] sm:$0xff]
      %v1271 = vld [vmem:[%s972 + $0xf1] sm:$0xff]
      %v1272 = vld [vmem:[%s972 + $0xf9] sm:$0xff]
      %v1273 = vld [vmem:[%s972 + $0x109] sm:$0xff]
      %v1274 = vld [vmem:[%s972 + $0x111] sm:$0xff]
      %v1275 = vld [vmem:[%s972 + $0x121] sm:$0xff]
      %v1276 = vld [vmem:[%s972 + $0x129] sm:$0xff]
      %v1277 = vld [vmem:[%s972 + $0x139] sm:$0xff]
      %v1278 = vld [vmem:[%s972 + $0x141] sm:$0xff]
      %v1279 = vld [vmem:[%s972 + $0x151] sm:$0xff]
      %v1280 = vld [vmem:[%s972 + $0x159] sm:$0xff]
      %v1281 = vld [vmem:[%s972 + $0x169] sm:$0xff]
      %v1282 = vld [vmem:[%s972 + $0x171] sm:$0xff]
      %s1283 = scalar_lea.vmem %s1, 16
      %v1284 = vld [vmem:[%s1283] sm:$0xf]
      %v1286 = vsel %vm266, %v1251, 0
      %v1289 = vsel %vm266, %v1252, 0
      %v1292 = vsel %vm266, %v1253, 0
      %v1295 = vsel %vm266, %v1254, 0
      %v1298 = vsel %vm266, %v1255, 0
      %v1301 = vsel %vm266, %v1256, 0
      %v1304 = vsel %vm266, %v1257, 0
      %v1307 = vsel %vm266, %v1258, 0
      %v1310 = vsel %vm266, %v1259, 0
      %v1313 = vsel %vm266, %v1260, 0
      %v1316 = vsel %vm266, %v1261, 0
      %v1319 = vsel %vm266, %v1262, 0
      %v1322 = vsel %vm266, %v1263, 0
      %v1325 = vsel %vm266, %v1264, 0
      %v1328 = vsel %vm266, %v1265, 0
      %v1331 = vsel %vm266, %v1266, 0
      %v1334 = vsel %vm266, %v1267, 0
      %v1337 = vsel %vm266, %v1268, 0
      %v1340 = vsel %vm266, %v1269, 0
      %v1343 = vsel %vm266, %v1270, 0
      %v1346 = vsel %vm266, %v1271, 0
      %v1349 = vsel %vm266, %v1272, 0
      %v1352 = vsel %vm266, %v1273, 0
      %v1355 = vsel %vm266, %v1274, 0
      %v1358 = vsel %vm266, %v1275, 0
      %v1361 = vsel %vm266, %v1276, 0
      %v1364 = vsel %vm266, %v1277, 0
      %v1367 = vsel %vm266, %v1278, 0
      %v1370 = vsel %vm266, %v1279, 0
      %v1373 = vsel %vm266, %v1280, 0
      %v1376 = vsel %vm266, %v1281, 0
      %v1379 = vsel %vm266, %v1282, 0
      %v1382 = vsel %vm363, %v1284, 0
      %1384 = vmatpush.msra.mxu0 0.0
      %1385 = vmatpush.msra.mxu0 0.0
      %1386 = vmatpush.msra.mxu0 0.0
      %1387 = vmatpush.msra.mxu0 0.0
      %1388 = vmatpush.msra.mxu0 0.0
      %1389 = vmatpush.msra.mxu0 0.0
      %1390 = vmatpush.msra.mxu0 0.0
      %1391 = vmatpush.msra.mxu0 0.0
      %1392 = vmatpush.msra.mxu0 0.0
      %1393 = vmatpush.msra.mxu0 0.0
      %1394 = vmatpush.msra.mxu0 0.0
      %1395 = vmatpush.msra.mxu0 0.0
      %1396 = vmatpush.msra.mxu0 0.0
      %1397 = vmatpush.msra.mxu0 0.0
      %1398 = vmatpush.msra.mxu0 0.0
      %1399 = vmatpush.msra.mxu0 %v1382
      %1400 = vmatmul.f32.gmra.mxu0 %v1286
      %v1401 = vpop.f32.mrf.mxu0
      %v1402 = vadd.f32 0.0, %v1401
      %1403 = vmatmul.f32.gmra.mxu0 %v1289
      %v1404 = vpop.f32.mrf.mxu0
      %v1405 = vadd.f32 0.0, %v1404
      %1406 = vmatmul.f32.gmra.mxu0 %v1292
      %v1407 = vpop.f32.mrf.mxu0
      %v1408 = vadd.f32 0.0, %v1407
      %1409 = vmatmul.f32.gmra.mxu0 %v1295
      %v1410 = vpop.f32.mrf.mxu0
      %v1411 = vadd.f32 0.0, %v1410
      %1412 = vmatmul.f32.gmra.mxu0 %v1298
      %v1413 = vpop.f32.mrf.mxu0
      %v1414 = vadd.f32 0.0, %v1413
      %1415 = vmatmul.f32.gmra.mxu0 %v1301
      %v1416 = vpop.f32.mrf.mxu0
      %v1417 = vadd.f32 0.0, %v1416
      %1418 = vmatmul.f32.gmra.mxu0 %v1304
      %v1419 = vpop.f32.mrf.mxu0
      %v1420 = vadd.f32 0.0, %v1419
      %1421 = vmatmul.f32.gmra.mxu0 %v1307
      %v1422 = vpop.f32.mrf.mxu0
      %v1423 = vadd.f32 0.0, %v1422
      %1424 = vmatmul.f32.gmra.mxu0 %v1310
      %v1425 = vpop.f32.mrf.mxu0
      %v1426 = vadd.f32 0.0, %v1425
      %1427 = vmatmul.f32.gmra.mxu0 %v1313
      %v1428 = vpop.f32.mrf.mxu0
      %v1429 = vadd.f32 0.0, %v1428
      %1430 = vmatmul.f32.gmra.mxu0 %v1316
      %v1431 = vpop.f32.mrf.mxu0
      %v1432 = vadd.f32 0.0, %v1431
      %1433 = vmatmul.f32.gmra.mxu0 %v1319
      %v1434 = vpop.f32.mrf.mxu0
      %v1435 = vadd.f32 0.0, %v1434
      %1436 = vmatmul.f32.gmra.mxu0 %v1322
      %v1437 = vpop.f32.mrf.mxu0
      %v1438 = vadd.f32 0.0, %v1437
      %1439 = vmatmul.f32.gmra.mxu0 %v1325
      %v1440 = vpop.f32.mrf.mxu0
      %v1441 = vadd.f32 0.0, %v1440
      %1442 = vmatmul.f32.gmra.mxu0 %v1328
      %v1443 = vpop.f32.mrf.mxu0
      %v1444 = vadd.f32 0.0, %v1443
      %1445 = vmatmul.f32.gmra.mxu0 %v1331
      %v1446 = vpop.f32.mrf.mxu0
      %v1447 = vadd.f32 0.0, %v1446
      %1448 = vmatmul.f32.gmra.mxu0 %v1334
      %v1449 = vpop.f32.mrf.mxu0
      %v1450 = vadd.f32 0.0, %v1449
      %1451 = vmatmul.f32.gmra.mxu0 %v1337
      %v1452 = vpop.f32.mrf.mxu0
      %v1453 = vadd.f32 0.0, %v1452
      %1454 = vmatmul.f32.gmra.mxu0 %v1340
      %v1455 = vpop.f32.mrf.mxu0
      %v1456 = vadd.f32 0.0, %v1455
      %1457 = vmatmul.f32.gmra.mxu0 %v1343
      %v1458 = vpop.f32.mrf.mxu0
      %v1459 = vadd.f32 0.0, %v1458
      %1460 = vmatmul.f32.gmra.mxu0 %v1346
      %v1461 = vpop.f32.mrf.mxu0
      %v1462 = vadd.f32 0.0, %v1461
      %1463 = vmatmul.f32.gmra.mxu0 %v1349
      %v1464 = vpop.f32.mrf.mxu0
      %v1465 = vadd.f32 0.0, %v1464
      %1466 = vmatmul.f32.gmra.mxu0 %v1352
      %v1467 = vpop.f32.mrf.mxu0
      %v1468 = vadd.f32 0.0, %v1467
      %1469 = vmatmul.f32.gmra.mxu0 %v1355
      %v1470 = vpop.f32.mrf.mxu0
      %v1471 = vadd.f32 0.0, %v1470
      %1472 = vmatmul.f32.gmra.mxu0 %v1358
      %v1473 = vpop.f32.mrf.mxu0
      %v1474 = vadd.f32 0.0, %v1473
      %1475 = vmatmul.f32.gmra.mxu0 %v1361
      %v1476 = vpop.f32.mrf.mxu0
      %v1477 = vadd.f32 0.0, %v1476
      %1478 = vmatmul.f32.gmra.mxu0 %v1364
      %v1479 = vpop.f32.mrf.mxu0
      %v1480 = vadd.f32 0.0, %v1479
      %1481 = vmatmul.f32.gmra.mxu0 %v1367
      %v1482 = vpop.f32.mrf.mxu0
      %v1483 = vadd.f32 0.0, %v1482
      %1484 = vmatmul.f32.gmra.mxu0 %v1370
      %v1485 = vpop.f32.mrf.mxu0
      %v1486 = vadd.f32 0.0, %v1485
      %1487 = vmatmul.f32.gmra.mxu0 %v1373
      %v1488 = vpop.f32.mrf.mxu0
      %v1489 = vadd.f32 0.0, %v1488
      %1490 = vmatmul.f32.gmra.mxu0 %v1376
      %v1491 = vpop.f32.mrf.mxu0
      %v1492 = vadd.f32 0.0, %v1491
      %1493 = vmatmul.f32.gmra.mxu0 %v1379
      %v1494 = vpop.f32.mrf.mxu0
      %v1495 = vadd.f32 0.0, %v1494
      %1496 = vdwg.mxu0
      %v1497 = vadd.f32 %v1219, %v1402
      %v1498 = vadd.f32 %v1220, %v1405
      %v1499 = vadd.f32 %v1221, %v1408
      %v1500 = vadd.f32 %v1222, %v1411
      %v1501 = vadd.f32 %v1223, %v1414
      %v1502 = vadd.f32 %v1224, %v1417
      %v1503 = vadd.f32 %v1225, %v1420
      %v1504 = vadd.f32 %v1226, %v1423
      %v1505 = vadd.f32 %v1227, %v1426
      %v1506 = vadd.f32 %v1228, %v1429
      %v1507 = vadd.f32 %v1229, %v1432
      %v1508 = vadd.f32 %v1230, %v1435
      %v1509 = vadd.f32 %v1231, %v1438
      %v1510 = vadd.f32 %v1232, %v1441
      %v1511 = vadd.f32 %v1233, %v1444
      %v1512 = vadd.f32 %v1234, %v1447
      %v1513 = vadd.f32 %v1235, %v1450
      %v1514 = vadd.f32 %v1236, %v1453
      %v1515 = vadd.f32 %v1237, %v1456
      %v1516 = vadd.f32 %v1238, %v1459
      %v1517 = vadd.f32 %v1239, %v1462
      %v1518 = vadd.f32 %v1240, %v1465
      %v1519 = vadd.f32 %v1241, %v1468
      %v1520 = vadd.f32 %v1242, %v1471
      %v1521 = vadd.f32 %v1243, %v1474
      %v1522 = vadd.f32 %v1244, %v1477
      %v1523 = vadd.f32 %v1245, %v1480
      %v1524 = vadd.f32 %v1246, %v1483
      %v1525 = vadd.f32 %v1247, %v1486
      %v1526 = vadd.f32 %v1248, %v1489
      %v1527 = vadd.f32 %v1249, %v1492
      %v1528 = vadd.f32 %v1250, %v1495
      %v1529 = vld [vmem:[%s972 + $0x2] sm:$0xff]
      %v1530 = vld [vmem:[%s972 + $0xa] sm:$0xff]
      %v1531 = vld [vmem:[%s972 + $0x1a] sm:$0xff]
      %v1532 = vld [vmem:[%s972 + $0x22] sm:$0xff]
      %v1533 = vld [vmem:[%s972 + $0x32] sm:$0xff]
      %v1534 = vld [vmem:[%s972 + $0x3a] sm:$0xff]
      %v1535 = vld [vmem:[%s972 + $0x4a] sm:$0xff]
      %v1536 = vld [vmem:[%s972 + $0x52] sm:$0xff]
      %v1537 = vld [vmem:[%s972 + $0x62] sm:$0xff]
      %v1538 = vld [vmem:[%s972 + $0x6a] sm:$0xff]
      %v1539 = vld [vmem:[%s972 + $0x7a] sm:$0xff]
      %v1540 = vld [vmem:[%s972 + $0x82] sm:$0xff]
      %v1541 = vld [vmem:[%s972 + $0x92] sm:$0xff]
      %v1542 = vld [vmem:[%s972 + $0x9a] sm:$0xff]
      %v1543 = vld [vmem:[%s972 + $0xaa] sm:$0xff]
      %v1544 = vld [vmem:[%s972 + $0xb2] sm:$0xff]
      %v1545 = vld [vmem:[%s972 + $0xc2] sm:$0xff]
      %v1546 = vld [vmem:[%s972 + $0xca] sm:$0xff]
      %v1547 = vld [vmem:[%s972 + $0xda] sm:$0xff]
      %v1548 = vld [vmem:[%s972 + $0xe2] sm:$0xff]
      %v1549 = vld [vmem:[%s972 + $0xf2] sm:$0xff]
      %v1550 = vld [vmem:[%s972 + $0xfa] sm:$0xff]
      %v1551 = vld [vmem:[%s972 + $0x10a] sm:$0xff]
      %v1552 = vld [vmem:[%s972 + $0x112] sm:$0xff]
      %v1553 = vld [vmem:[%s972 + $0x122] sm:$0xff]
      %v1554 = vld [vmem:[%s972 + $0x12a] sm:$0xff]
      %v1555 = vld [vmem:[%s972 + $0x13a] sm:$0xff]
      %v1556 = vld [vmem:[%s972 + $0x142] sm:$0xff]
      %v1557 = vld [vmem:[%s972 + $0x152] sm:$0xff]
      %v1558 = vld [vmem:[%s972 + $0x15a] sm:$0xff]
      %v1559 = vld [vmem:[%s972 + $0x16a] sm:$0xff]
      %v1560 = vld [vmem:[%s972 + $0x172] sm:$0xff]
      %s1561 = scalar_lea.vmem %s1, 20
      %v1562 = vld [vmem:[%s1561] sm:$0xf]
      %v1564 = vsel %vm266, %v1529, 0
      %v1567 = vsel %vm266, %v1530, 0
      %v1570 = vsel %vm266, %v1531, 0
      %v1573 = vsel %vm266, %v1532, 0
      %v1576 = vsel %vm266, %v1533, 0
      %v1579 = vsel %vm266, %v1534, 0
      %v1582 = vsel %vm266, %v1535, 0
      %v1585 = vsel %vm266, %v1536, 0
      %v1588 = vsel %vm266, %v1537, 0
      %v1591 = vsel %vm266, %v1538, 0
      %v1594 = vsel %vm266, %v1539, 0
      %v1597 = vsel %vm266, %v1540, 0
      %v1600 = vsel %vm266, %v1541, 0
      %v1603 = vsel %vm266, %v1542, 0
      %v1606 = vsel %vm266, %v1543, 0
      %v1609 = vsel %vm266, %v1544, 0
      %v1612 = vsel %vm266, %v1545, 0
      %v1615 = vsel %vm266, %v1546, 0
      %v1618 = vsel %vm266, %v1547, 0
      %v1621 = vsel %vm266, %v1548, 0
      %v1624 = vsel %vm266, %v1549, 0
      %v1627 = vsel %vm266, %v1550, 0
      %v1630 = vsel %vm266, %v1551, 0
      %v1633 = vsel %vm266, %v1552, 0
      %v1636 = vsel %vm266, %v1553, 0
      %v1639 = vsel %vm266, %v1554, 0
      %v1642 = vsel %vm266, %v1555, 0
      %v1645 = vsel %vm266, %v1556, 0
      %v1648 = vsel %vm266, %v1557, 0
      %v1651 = vsel %vm266, %v1558, 0
      %v1654 = vsel %vm266, %v1559, 0
      %v1657 = vsel %vm266, %v1560, 0
      %v1660 = vsel %vm363, %v1562, 0
      %1662 = vmatpush.msra.mxu0 0.0
      %1663 = vmatpush.msra.mxu0 0.0
      %1664 = vmatpush.msra.mxu0 0.0
      %1665 = vmatpush.msra.mxu0 0.0
      %1666 = vmatpush.msra.mxu0 0.0
      %1667 = vmatpush.msra.mxu0 0.0
      %1668 = vmatpush.msra.mxu0 0.0
      %1669 = vmatpush.msra.mxu0 0.0
      %1670 = vmatpush.msra.mxu0 0.0
      %1671 = vmatpush.msra.mxu0 0.0
      %1672 = vmatpush.msra.mxu0 0.0
      %1673 = vmatpush.msra.mxu0 0.0
      %1674 = vmatpush.msra.mxu0 0.0
      %1675 = vmatpush.msra.mxu0 0.0
      %1676 = vmatpush.msra.mxu0 0.0
      %1677 = vmatpush.msra.mxu0 %v1660
      %1678 = vmatmul.f32.gmra.mxu0 %v1564
      %v1679 = vpop.f32.mrf.mxu0
      %v1680 = vadd.f32 0.0, %v1679
      %1681 = vmatmul.f32.gmra.mxu0 %v1567
      %v1682 = vpop.f32.mrf.mxu0
      %v1683 = vadd.f32 0.0, %v1682
      %1684 = vmatmul.f32.gmra.mxu0 %v1570
      %v1685 = vpop.f32.mrf.mxu0
      %v1686 = vadd.f32 0.0, %v1685
      %1687 = vmatmul.f32.gmra.mxu0 %v1573
      %v1688 = vpop.f32.mrf.mxu0
      %v1689 = vadd.f32 0.0, %v1688
      %1690 = vmatmul.f32.gmra.mxu0 %v1576
      %v1691 = vpop.f32.mrf.mxu0
      %v1692 = vadd.f32 0.0, %v1691
      %1693 = vmatmul.f32.gmra.mxu0 %v1579
      %v1694 = vpop.f32.mrf.mxu0
      %v1695 = vadd.f32 0.0, %v1694
      %1696 = vmatmul.f32.gmra.mxu0 %v1582
      %v1697 = vpop.f32.mrf.mxu0
      %v1698 = vadd.f32 0.0, %v1697
      %1699 = vmatmul.f32.gmra.mxu0 %v1585
      %v1700 = vpop.f32.mrf.mxu0
      %v1701 = vadd.f32 0.0, %v1700
      %1702 = vmatmul.f32.gmra.mxu0 %v1588
      %v1703 = vpop.f32.mrf.mxu0
      %v1704 = vadd.f32 0.0, %v1703
      %1705 = vmatmul.f32.gmra.mxu0 %v1591
      %v1706 = vpop.f32.mrf.mxu0
      %v1707 = vadd.f32 0.0, %v1706
      %1708 = vmatmul.f32.gmra.mxu0 %v1594
      %v1709 = vpop.f32.mrf.mxu0
      %v1710 = vadd.f32 0.0, %v1709
      %1711 = vmatmul.f32.gmra.mxu0 %v1597
      %v1712 = vpop.f32.mrf.mxu0
      %v1713 = vadd.f32 0.0, %v1712
      %1714 = vmatmul.f32.gmra.mxu0 %v1600
      %v1715 = vpop.f32.mrf.mxu0
      %v1716 = vadd.f32 0.0, %v1715
      %1717 = vmatmul.f32.gmra.mxu0 %v1603
      %v1718 = vpop.f32.mrf.mxu0
      %v1719 = vadd.f32 0.0, %v1718
      %1720 = vmatmul.f32.gmra.mxu0 %v1606
      %v1721 = vpop.f32.mrf.mxu0
      %v1722 = vadd.f32 0.0, %v1721
      %1723 = vmatmul.f32.gmra.mxu0 %v1609
      %v1724 = vpop.f32.mrf.mxu0
      %v1725 = vadd.f32 0.0, %v1724
      %1726 = vmatmul.f32.gmra.mxu0 %v1612
      %v1727 = vpop.f32.mrf.mxu0
      %v1728 = vadd.f32 0.0, %v1727
      %1729 = vmatmul.f32.gmra.mxu0 %v1615
      %v1730 = vpop.f32.mrf.mxu0
      %v1731 = vadd.f32 0.0, %v1730
      %1732 = vmatmul.f32.gmra.mxu0 %v1618
      %v1733 = vpop.f32.mrf.mxu0
      %v1734 = vadd.f32 0.0, %v1733
      %1735 = vmatmul.f32.gmra.mxu0 %v1621
      %v1736 = vpop.f32.mrf.mxu0
      %v1737 = vadd.f32 0.0, %v1736
      %1738 = vmatmul.f32.gmra.mxu0 %v1624
      %v1739 = vpop.f32.mrf.mxu0
      %v1740 = vadd.f32 0.0, %v1739
      %1741 = vmatmul.f32.gmra.mxu0 %v1627
      %v1742 = vpop.f32.mrf.mxu0
      %v1743 = vadd.f32 0.0, %v1742
      %1744 = vmatmul.f32.gmra.mxu0 %v1630
      %v1745 = vpop.f32.mrf.mxu0
      %v1746 = vadd.f32 0.0, %v1745
      %1747 = vmatmul.f32.gmra.mxu0 %v1633
      %v1748 = vpop.f32.mrf.mxu0
      %v1749 = vadd.f32 0.0, %v1748
      %1750 = vmatmul.f32.gmra.mxu0 %v1636
      %v1751 = vpop.f32.mrf.mxu0
      %v1752 = vadd.f32 0.0, %v1751
      %1753 = vmatmul.f32.gmra.mxu0 %v1639
      %v1754 = vpop.f32.mrf.mxu0
      %v1755 = vadd.f32 0.0, %v1754
      %1756 = vmatmul.f32.gmra.mxu0 %v1642
      %v1757 = vpop.f32.mrf.mxu0
      %v1758 = vadd.f32 0.0, %v1757
      %1759 = vmatmul.f32.gmra.mxu0 %v1645
      %v1760 = vpop.f32.mrf.mxu0
      %v1761 = vadd.f32 0.0, %v1760
      %1762 = vmatmul.f32.gmra.mxu0 %v1648
      %v1763 = vpop.f32.mrf.mxu0
      %v1764 = vadd.f32 0.0, %v1763
      %1765 = vmatmul.f32.gmra.mxu0 %v1651
      %v1766 = vpop.f32.mrf.mxu0
      %v1767 = vadd.f32 0.0, %v1766
      %1768 = vmatmul.f32.gmra.mxu0 %v1654
      %v1769 = vpop.f32.mrf.mxu0
      %v1770 = vadd.f32 0.0, %v1769
      %1771 = vmatmul.f32.gmra.mxu0 %v1657
      %v1772 = vpop.f32.mrf.mxu0
      %v1773 = vadd.f32 0.0, %v1772
      %1774 = vdwg.mxu0
      %v1775 = vadd.f32 %v1497, %v1680
      %v1776 = vadd.f32 %v1498, %v1683
      %v1777 = vadd.f32 %v1499, %v1686
      %v1778 = vadd.f32 %v1500, %v1689
      %v1779 = vadd.f32 %v1501, %v1692
      %v1780 = vadd.f32 %v1502, %v1695
      %v1781 = vadd.f32 %v1503, %v1698
      %v1782 = vadd.f32 %v1504, %v1701
      %v1783 = vadd.f32 %v1505, %v1704
      %v1784 = vadd.f32 %v1506, %v1707
      %v1785 = vadd.f32 %v1507, %v1710
      %v1786 = vadd.f32 %v1508, %v1713
      %v1787 = vadd.f32 %v1509, %v1716
      %v1788 = vadd.f32 %v1510, %v1719
      %v1789 = vadd.f32 %v1511, %v1722
      %v1790 = vadd.f32 %v1512, %v1725
      %v1791 = vadd.f32 %v1513, %v1728
      %v1792 = vadd.f32 %v1514, %v1731
      %v1793 = vadd.f32 %v1515, %v1734
      %v1794 = vadd.f32 %v1516, %v1737
      %v1795 = vadd.f32 %v1517, %v1740
      %v1796 = vadd.f32 %v1518, %v1743
      %v1797 = vadd.f32 %v1519, %v1746
      %v1798 = vadd.f32 %v1520, %v1749
      %v1799 = vadd.f32 %v1521, %v1752
      %v1800 = vadd.f32 %v1522, %v1755
      %v1801 = vadd.f32 %v1523, %v1758
      %v1802 = vadd.f32 %v1524, %v1761
      %v1803 = vadd.f32 %v1525, %v1764
      %v1804 = vadd.f32 %v1526, %v1767
      %v1805 = vadd.f32 %v1527, %v1770
      %v1806 = vadd.f32 %v1528, %v1773
      %s1807 = sadd.s32 %s196, 2
      %s1808 = smul.u32 %s1807, 24
      %s1809 = scalar_lea.vmem %s184, %s1808
      %v1810 = vld [vmem:[%s1809] sm:$0xff]
      %v1811 = vld [vmem:[%s1809 + $0x8] sm:$0xff]
      %v1812 = vld [vmem:[%s1809 + $0x18] sm:$0xff]
      %v1813 = vld [vmem:[%s1809 + $0x20] sm:$0xff]
      %v1814 = vld [vmem:[%s1809 + $0x30] sm:$0xff]
      %v1815 = vld [vmem:[%s1809 + $0x38] sm:$0xff]
      %v1816 = vld [vmem:[%s1809 + $0x48] sm:$0xff]
      %v1817 = vld [vmem:[%s1809 + $0x50] sm:$0xff]
      %v1818 = vld [vmem:[%s1809 + $0x60] sm:$0xff]
      %v1819 = vld [vmem:[%s1809 + $0x68] sm:$0xff]
      %v1820 = vld [vmem:[%s1809 + $0x78] sm:$0xff]
      %v1821 = vld [vmem:[%s1809 + $0x80] sm:$0xff]
      %v1822 = vld [vmem:[%s1809 + $0x90] sm:$0xff]
      %v1823 = vld [vmem:[%s1809 + $0x98] sm:$0xff]
      %v1824 = vld [vmem:[%s1809 + $0xa8] sm:$0xff]
      %v1825 = vld [vmem:[%s1809 + $0xb0] sm:$0xff]
      %v1826 = vld [vmem:[%s1809 + $0xc0] sm:$0xff]
      %v1827 = vld [vmem:[%s1809 + $0xc8] sm:$0xff]
      %v1828 = vld [vmem:[%s1809 + $0xd8] sm:$0xff]
      %v1829 = vld [vmem:[%s1809 + $0xe0] sm:$0xff]
      %v1830 = vld [vmem:[%s1809 + $0xf0] sm:$0xff]
      %v1831 = vld [vmem:[%s1809 + $0xf8] sm:$0xff]
      %v1832 = vld [vmem:[%s1809 + $0x108] sm:$0xff]
      %v1833 = vld [vmem:[%s1809 + $0x110] sm:$0xff]
      %v1834 = vld [vmem:[%s1809 + $0x120] sm:$0xff]
      %v1835 = vld [vmem:[%s1809 + $0x128] sm:$0xff]
      %v1836 = vld [vmem:[%s1809 + $0x138] sm:$0xff]
      %v1837 = vld [vmem:[%s1809 + $0x140] sm:$0xff]
      %v1838 = vld [vmem:[%s1809 + $0x150] sm:$0xff]
      %v1839 = vld [vmem:[%s1809 + $0x158] sm:$0xff]
      %v1840 = vld [vmem:[%s1809 + $0x168] sm:$0xff]
      %v1841 = vld [vmem:[%s1809 + $0x170] sm:$0xff]
      %s1842 = scalar_lea.vmem %s1, 24
      %v1843 = vld [vmem:[%s1842] sm:$0xf]
      %v1845 = vsel %vm266, %v1810, 0
      %v1848 = vsel %vm266, %v1811, 0
      %v1851 = vsel %vm266, %v1812, 0
      %v1854 = vsel %vm266, %v1813, 0
      %v1857 = vsel %vm266, %v1814, 0
      %v1860 = vsel %vm266, %v1815, 0
      %v1863 = vsel %vm266, %v1816, 0
      %v1866 = vsel %vm266, %v1817, 0
      %v1869 = vsel %vm266, %v1818, 0
      %v1872 = vsel %vm266, %v1819, 0
      %v1875 = vsel %vm266, %v1820, 0
      %v1878 = vsel %vm266, %v1821, 0
      %v1881 = vsel %vm266, %v1822, 0
      %v1884 = vsel %vm266, %v1823, 0
      %v1887 = vsel %vm266, %v1824, 0
      %v1890 = vsel %vm266, %v1825, 0
      %v1893 = vsel %vm266, %v1826, 0
      %v1896 = vsel %vm266, %v1827, 0
      %v1899 = vsel %vm266, %v1828, 0
      %v1902 = vsel %vm266, %v1829, 0
      %v1905 = vsel %vm266, %v1830, 0
      %v1908 = vsel %vm266, %v1831, 0
      %v1911 = vsel %vm266, %v1832, 0
      %v1914 = vsel %vm266, %v1833, 0
      %v1917 = vsel %vm266, %v1834, 0
      %v1920 = vsel %vm266, %v1835, 0
      %v1923 = vsel %vm266, %v1836, 0
      %v1926 = vsel %vm266, %v1837, 0
      %v1929 = vsel %vm266, %v1838, 0
      %v1932 = vsel %vm266, %v1839, 0
      %v1935 = vsel %vm266, %v1840, 0
      %v1938 = vsel %vm266, %v1841, 0
      %v1941 = vsel %vm363, %v1843, 0
      %1943 = vmatpush.msra.mxu0 0.0
      %1944 = vmatpush.msra.mxu0 0.0
      %1945 = vmatpush.msra.mxu0 0.0
      %1946 = vmatpush.msra.mxu0 0.0
      %1947 = vmatpush.msra.mxu0 0.0
      %1948 = vmatpush.msra.mxu0 0.0
      %1949 = vmatpush.msra.mxu0 0.0
      %1950 = vmatpush.msra.mxu0 0.0
      %1951 = vmatpush.msra.mxu0 0.0
      %1952 = vmatpush.msra.mxu0 0.0
      %1953 = vmatpush.msra.mxu0 0.0
      %1954 = vmatpush.msra.mxu0 0.0
      %1955 = vmatpush.msra.mxu0 0.0
      %1956 = vmatpush.msra.mxu0 0.0
      %1957 = vmatpush.msra.mxu0 0.0
      %1958 = vmatpush.msra.mxu0 %v1941
      %1959 = vmatmul.f32.gmra.mxu0 %v1845
      %v1960 = vpop.f32.mrf.mxu0
      %v1961 = vadd.f32 0.0, %v1960
      %1962 = vmatmul.f32.gmra.mxu0 %v1848
      %v1963 = vpop.f32.mrf.mxu0
      %v1964 = vadd.f32 0.0, %v1963
      %1965 = vmatmul.f32.gmra.mxu0 %v1851
      %v1966 = vpop.f32.mrf.mxu0
      %v1967 = vadd.f32 0.0, %v1966
      %1968 = vmatmul.f32.gmra.mxu0 %v1854
      %v1969 = vpop.f32.mrf.mxu0
      %v1970 = vadd.f32 0.0, %v1969
      %1971 = vmatmul.f32.gmra.mxu0 %v1857
      %v1972 = vpop.f32.mrf.mxu0
      %v1973 = vadd.f32 0.0, %v1972
      %1974 = vmatmul.f32.gmra.mxu0 %v1860
      %v1975 = vpop.f32.mrf.mxu0
      %v1976 = vadd.f32 0.0, %v1975
      %1977 = vmatmul.f32.gmra.mxu0 %v1863
      %v1978 = vpop.f32.mrf.mxu0
      %v1979 = vadd.f32 0.0, %v1978
      %1980 = vmatmul.f32.gmra.mxu0 %v1866
      %v1981 = vpop.f32.mrf.mxu0
      %v1982 = vadd.f32 0.0, %v1981
      %1983 = vmatmul.f32.gmra.mxu0 %v1869
      %v1984 = vpop.f32.mrf.mxu0
      %v1985 = vadd.f32 0.0, %v1984
      %1986 = vmatmul.f32.gmra.mxu0 %v1872
      %v1987 = vpop.f32.mrf.mxu0
      %v1988 = vadd.f32 0.0, %v1987
      %1989 = vmatmul.f32.gmra.mxu0 %v1875
      %v1990 = vpop.f32.mrf.mxu0
      %v1991 = vadd.f32 0.0, %v1990
      %1992 = vmatmul.f32.gmra.mxu0 %v1878
      %v1993 = vpop.f32.mrf.mxu0
      %v1994 = vadd.f32 0.0, %v1993
      %1995 = vmatmul.f32.gmra.mxu0 %v1881
      %v1996 = vpop.f32.mrf.mxu0
      %v1997 = vadd.f32 0.0, %v1996
      %1998 = vmatmul.f32.gmra.mxu0 %v1884
      %v1999 = vpop.f32.mrf.mxu0
      %v2000 = vadd.f32 0.0, %v1999
      %2001 = vmatmul.f32.gmra.mxu0 %v1887
      %v2002 = vpop.f32.mrf.mxu0
      %v2003 = vadd.f32 0.0, %v2002
      %2004 = vmatmul.f32.gmra.mxu0 %v1890
      %v2005 = vpop.f32.mrf.mxu0
      %v2006 = vadd.f32 0.0, %v2005
      %2007 = vmatmul.f32.gmra.mxu0 %v1893
      %v2008 = vpop.f32.mrf.mxu0
      %v2009 = vadd.f32 0.0, %v2008
      %2010 = vmatmul.f32.gmra.mxu0 %v1896
      %v2011 = vpop.f32.mrf.mxu0
      %v2012 = vadd.f32 0.0, %v2011
      %2013 = vmatmul.f32.gmra.mxu0 %v1899
      %v2014 = vpop.f32.mrf.mxu0
      %v2015 = vadd.f32 0.0, %v2014
      %2016 = vmatmul.f32.gmra.mxu0 %v1902
      %v2017 = vpop.f32.mrf.mxu0
      %v2018 = vadd.f32 0.0, %v2017
      %2019 = vmatmul.f32.gmra.mxu0 %v1905
      %v2020 = vpop.f32.mrf.mxu0
      %v2021 = vadd.f32 0.0, %v2020
      %2022 = vmatmul.f32.gmra.mxu0 %v1908
      %v2023 = vpop.f32.mrf.mxu0
      %v2024 = vadd.f32 0.0, %v2023
      %2025 = vmatmul.f32.gmra.mxu0 %v1911
      %v2026 = vpop.f32.mrf.mxu0
      %v2027 = vadd.f32 0.0, %v2026
      %2028 = vmatmul.f32.gmra.mxu0 %v1914
      %v2029 = vpop.f32.mrf.mxu0
      %v2030 = vadd.f32 0.0, %v2029
      %2031 = vmatmul.f32.gmra.mxu0 %v1917
      %v2032 = vpop.f32.mrf.mxu0
      %v2033 = vadd.f32 0.0, %v2032
      %2034 = vmatmul.f32.gmra.mxu0 %v1920
      %v2035 = vpop.f32.mrf.mxu0
      %v2036 = vadd.f32 0.0, %v2035
      %2037 = vmatmul.f32.gmra.mxu0 %v1923
      %v2038 = vpop.f32.mrf.mxu0
      %v2039 = vadd.f32 0.0, %v2038
      %2040 = vmatmul.f32.gmra.mxu0 %v1926
      %v2041 = vpop.f32.mrf.mxu0
      %v2042 = vadd.f32 0.0, %v2041
      %2043 = vmatmul.f32.gmra.mxu0 %v1929
      %v2044 = vpop.f32.mrf.mxu0
      %v2045 = vadd.f32 0.0, %v2044
      %2046 = vmatmul.f32.gmra.mxu0 %v1932
      %v2047 = vpop.f32.mrf.mxu0
      %v2048 = vadd.f32 0.0, %v2047
      %2049 = vmatmul.f32.gmra.mxu0 %v1935
      %v2050 = vpop.f32.mrf.mxu0
      %v2051 = vadd.f32 0.0, %v2050
      %2052 = vmatmul.f32.gmra.mxu0 %v1938
      %v2053 = vpop.f32.mrf.mxu0
      %v2054 = vadd.f32 0.0, %v2053
      %2055 = vdwg.mxu0
      %v2056 = vadd.f32 %v1775, %v1961
      %v2057 = vadd.f32 %v1776, %v1964
      %v2058 = vadd.f32 %v1777, %v1967
      %v2059 = vadd.f32 %v1778, %v1970
      %v2060 = vadd.f32 %v1779, %v1973
      %v2061 = vadd.f32 %v1780, %v1976
      %v2062 = vadd.f32 %v1781, %v1979
      %v2063 = vadd.f32 %v1782, %v1982
      %v2064 = vadd.f32 %v1783, %v1985
      %v2065 = vadd.f32 %v1784, %v1988
      %v2066 = vadd.f32 %v1785, %v1991
      %v2067 = vadd.f32 %v1786, %v1994
      %v2068 = vadd.f32 %v1787, %v1997
      %v2069 = vadd.f32 %v1788, %v2000
      %v2070 = vadd.f32 %v1789, %v2003
      %v2071 = vadd.f32 %v1790, %v2006
      %v2072 = vadd.f32 %v1791, %v2009
      %v2073 = vadd.f32 %v1792, %v2012
      %v2074 = vadd.f32 %v1793, %v2015
      %v2075 = vadd.f32 %v1794, %v2018
      %v2076 = vadd.f32 %v1795, %v2021
      %v2077 = vadd.f32 %v1796, %v2024
      %v2078 = vadd.f32 %v1797, %v2027
      %v2079 = vadd.f32 %v1798, %v2030
      %v2080 = vadd.f32 %v1799, %v2033
      %v2081 = vadd.f32 %v1800, %v2036
      %v2082 = vadd.f32 %v1801, %v2039
      %v2083 = vadd.f32 %v1802, %v2042
      %v2084 = vadd.f32 %v1803, %v2045
      %v2085 = vadd.f32 %v1804, %v2048
      %v2086 = vadd.f32 %v1805, %v2051
      %v2087 = vadd.f32 %v1806, %v2054
      %v2088 = vld [vmem:[%s1809 + $0x1] sm:$0xff]
      %v2089 = vld [vmem:[%s1809 + $0x9] sm:$0xff]
      %v2090 = vld [vmem:[%s1809 + $0x19] sm:$0xff]
      %v2091 = vld [vmem:[%s1809 + $0x21] sm:$0xff]
      %v2092 = vld [vmem:[%s1809 + $0x31] sm:$0xff]
      %v2093 = vld [vmem:[%s1809 + $0x39] sm:$0xff]
      %v2094 = vld [vmem:[%s1809 + $0x49] sm:$0xff]
      %v2095 = vld [vmem:[%s1809 + $0x51] sm:$0xff]
      %v2096 = vld [vmem:[%s1809 + $0x61] sm:$0xff]
      %v2097 = vld [vmem:[%s1809 + $0x69] sm:$0xff]
      %v2098 = vld [vmem:[%s1809 + $0x79] sm:$0xff]
      %v2099 = vld [vmem:[%s1809 + $0x81] sm:$0xff]
      %v2100 = vld [vmem:[%s1809 + $0x91] sm:$0xff]
      %v2101 = vld [vmem:[%s1809 + $0x99] sm:$0xff]
      %v2102 = vld [vmem:[%s1809 + $0xa9] sm:$0xff]
      %v2103 = vld [vmem:[%s1809 + $0xb1] sm:$0xff]
      %v2104 = vld [vmem:[%s1809 + $0xc1] sm:$0xff]
      %v2105 = vld [vmem:[%s1809 + $0xc9] sm:$0xff]
      %v2106 = vld [vmem:[%s1809 + $0xd9] sm:$0xff]
      %v2107 = vld [vmem:[%s1809 + $0xe1] sm:$0xff]
      %v2108 = vld [vmem:[%s1809 + $0xf1] sm:$0xff]
      %v2109 = vld [vmem:[%s1809 + $0xf9] sm:$0xff]
      %v2110 = vld [vmem:[%s1809 + $0x109] sm:$0xff]
      %v2111 = vld [vmem:[%s1809 + $0x111] sm:$0xff]
      %v2112 = vld [vmem:[%s1809 + $0x121] sm:$0xff]
      %v2113 = vld [vmem:[%s1809 + $0x129] sm:$0xff]
      %v2114 = vld [vmem:[%s1809 + $0x139] sm:$0xff]
      %v2115 = vld [vmem:[%s1809 + $0x141] sm:$0xff]
      %v2116 = vld [vmem:[%s1809 + $0x151] sm:$0xff]
      %v2117 = vld [vmem:[%s1809 + $0x159] sm:$0xff]
      %v2118 = vld [vmem:[%s1809 + $0x169] sm:$0xff]
      %v2119 = vld [vmem:[%s1809 + $0x171] sm:$0xff]
      %s2120 = scalar_lea.vmem %s1, 28
      %v2121 = vld [vmem:[%s2120] sm:$0xf]
      %v2123 = vsel %vm266, %v2088, 0
      %v2126 = vsel %vm266, %v2089, 0
      %v2129 = vsel %vm266, %v2090, 0
      %v2132 = vsel %vm266, %v2091, 0
      %v2135 = vsel %vm266, %v2092, 0
      %v2138 = vsel %vm266, %v2093, 0
      %v2141 = vsel %vm266, %v2094, 0
      %v2144 = vsel %vm266, %v2095, 0
      %v2147 = vsel %vm266, %v2096, 0
      %v2150 = vsel %vm266, %v2097, 0
      %v2153 = vsel %vm266, %v2098, 0
      %v2156 = vsel %vm266, %v2099, 0
      %v2159 = vsel %vm266, %v2100, 0
      %v2162 = vsel %vm266, %v2101, 0
      %v2165 = vsel %vm266, %v2102, 0
      %v2168 = vsel %vm266, %v2103, 0
      %v2171 = vsel %vm266, %v2104, 0
      %v2174 = vsel %vm266, %v2105, 0
      %v2177 = vsel %vm266, %v2106, 0
      %v2180 = vsel %vm266, %v2107, 0
      %v2183 = vsel %vm266, %v2108, 0
      %v2186 = vsel %vm266, %v2109, 0
      %v2189 = vsel %vm266, %v2110, 0
      %v2192 = vsel %vm266, %v2111, 0
      %v2195 = vsel %vm266, %v2112, 0
      %v2198 = vsel %vm266, %v2113, 0
      %v2201 = vsel %vm266, %v2114, 0
      %v2204 = vsel %vm266, %v2115, 0
      %v2207 = vsel %vm266, %v2116, 0
      %v2210 = vsel %vm266, %v2117, 0
      %v2213 = vsel %vm266, %v2118, 0
      %v2216 = vsel %vm266, %v2119, 0
      %v2219 = vsel %vm363, %v2121, 0
      %2221 = vmatpush.msra.mxu0 0.0
      %2222 = vmatpush.msra.mxu0 0.0
      %2223 = vmatpush.msra.mxu0 0.0
      %2224 = vmatpush.msra.mxu0 0.0
      %2225 = vmatpush.msra.mxu0 0.0
      %2226 = vmatpush.msra.mxu0 0.0
      %2227 = vmatpush.msra.mxu0 0.0
      %2228 = vmatpush.msra.mxu0 0.0
      %2229 = vmatpush.msra.mxu0 0.0
      %2230 = vmatpush.msra.mxu0 0.0
      %2231 = vmatpush.msra.mxu0 0.0
      %2232 = vmatpush.msra.mxu0 0.0
      %2233 = vmatpush.msra.mxu0 0.0
      %2234 = vmatpush.msra.mxu0 0.0
      %2235 = vmatpush.msra.mxu0 0.0
      %2236 = vmatpush.msra.mxu0 %v2219
      %2237 = vmatmul.f32.gmra.mxu0 %v2123
      %v2238 = vpop.f32.mrf.mxu0
      %v2239 = vadd.f32 0.0, %v2238
      %2240 = vmatmul.f32.gmra.mxu0 %v2126
      %v2241 = vpop.f32.mrf.mxu0
      %v2242 = vadd.f32 0.0, %v2241
      %2243 = vmatmul.f32.gmra.mxu0 %v2129
      %v2244 = vpop.f32.mrf.mxu0
      %v2245 = vadd.f32 0.0, %v2244
      %2246 = vmatmul.f32.gmra.mxu0 %v2132
      %v2247 = vpop.f32.mrf.mxu0
      %v2248 = vadd.f32 0.0, %v2247
      %2249 = vmatmul.f32.gmra.mxu0 %v2135
      %v2250 = vpop.f32.mrf.mxu0
      %v2251 = vadd.f32 0.0, %v2250
      %2252 = vmatmul.f32.gmra.mxu0 %v2138
      %v2253 = vpop.f32.mrf.mxu0
      %v2254 = vadd.f32 0.0, %v2253
      %2255 = vmatmul.f32.gmra.mxu0 %v2141
      %v2256 = vpop.f32.mrf.mxu0
      %v2257 = vadd.f32 0.0, %v2256
      %2258 = vmatmul.f32.gmra.mxu0 %v2144
      %v2259 = vpop.f32.mrf.mxu0
      %v2260 = vadd.f32 0.0, %v2259
      %2261 = vmatmul.f32.gmra.mxu0 %v2147
      %v2262 = vpop.f32.mrf.mxu0
      %v2263 = vadd.f32 0.0, %v2262
      %2264 = vmatmul.f32.gmra.mxu0 %v2150
      %v2265 = vpop.f32.mrf.mxu0
      %v2266 = vadd.f32 0.0, %v2265
      %2267 = vmatmul.f32.gmra.mxu0 %v2153
      %v2268 = vpop.f32.mrf.mxu0
      %v2269 = vadd.f32 0.0, %v2268
      %2270 = vmatmul.f32.gmra.mxu0 %v2156
      %v2271 = vpop.f32.mrf.mxu0
      %v2272 = vadd.f32 0.0, %v2271
      %2273 = vmatmul.f32.gmra.mxu0 %v2159
      %v2274 = vpop.f32.mrf.mxu0
      %v2275 = vadd.f32 0.0, %v2274
      %2276 = vmatmul.f32.gmra.mxu0 %v2162
      %v2277 = vpop.f32.mrf.mxu0
      %v2278 = vadd.f32 0.0, %v2277
      %2279 = vmatmul.f32.gmra.mxu0 %v2165
      %v2280 = vpop.f32.mrf.mxu0
      %v2281 = vadd.f32 0.0, %v2280
      %2282 = vmatmul.f32.gmra.mxu0 %v2168
      %v2283 = vpop.f32.mrf.mxu0
      %v2284 = vadd.f32 0.0, %v2283
      %2285 = vmatmul.f32.gmra.mxu0 %v2171
      %v2286 = vpop.f32.mrf.mxu0
      %v2287 = vadd.f32 0.0, %v2286
      %2288 = vmatmul.f32.gmra.mxu0 %v2174
      %v2289 = vpop.f32.mrf.mxu0
      %v2290 = vadd.f32 0.0, %v2289
      %2291 = vmatmul.f32.gmra.mxu0 %v2177
      %v2292 = vpop.f32.mrf.mxu0
      %v2293 = vadd.f32 0.0, %v2292
      %2294 = vmatmul.f32.gmra.mxu0 %v2180
      %v2295 = vpop.f32.mrf.mxu0
      %v2296 = vadd.f32 0.0, %v2295
      %2297 = vmatmul.f32.gmra.mxu0 %v2183
      %v2298 = vpop.f32.mrf.mxu0
      %v2299 = vadd.f32 0.0, %v2298
      %2300 = vmatmul.f32.gmra.mxu0 %v2186
      %v2301 = vpop.f32.mrf.mxu0
      %v2302 = vadd.f32 0.0, %v2301
      %2303 = vmatmul.f32.gmra.mxu0 %v2189
      %v2304 = vpop.f32.mrf.mxu0
      %v2305 = vadd.f32 0.0, %v2304
      %2306 = vmatmul.f32.gmra.mxu0 %v2192
      %v2307 = vpop.f32.mrf.mxu0
      %v2308 = vadd.f32 0.0, %v2307
      %2309 = vmatmul.f32.gmra.mxu0 %v2195
      %v2310 = vpop.f32.mrf.mxu0
      %v2311 = vadd.f32 0.0, %v2310
      %2312 = vmatmul.f32.gmra.mxu0 %v2198
      %v2313 = vpop.f32.mrf.mxu0
      %v2314 = vadd.f32 0.0, %v2313
      %2315 = vmatmul.f32.gmra.mxu0 %v2201
      %v2316 = vpop.f32.mrf.mxu0
      %v2317 = vadd.f32 0.0, %v2316
      %2318 = vmatmul.f32.gmra.mxu0 %v2204
      %v2319 = vpop.f32.mrf.mxu0
      %v2320 = vadd.f32 0.0, %v2319
      %2321 = vmatmul.f32.gmra.mxu0 %v2207
      %v2322 = vpop.f32.mrf.mxu0
      %v2323 = vadd.f32 0.0, %v2322
      %2324 = vmatmul.f32.gmra.mxu0 %v2210
      %v2325 = vpop.f32.mrf.mxu0
      %v2326 = vadd.f32 0.0, %v2325
      %2327 = vmatmul.f32.gmra.mxu0 %v2213
      %v2328 = vpop.f32.mrf.mxu0
      %v2329 = vadd.f32 0.0, %v2328
      %2330 = vmatmul.f32.gmra.mxu0 %v2216
      %v2331 = vpop.f32.mrf.mxu0
      %v2332 = vadd.f32 0.0, %v2331
      %2333 = vdwg.mxu0
      %v2334 = vadd.f32 %v2056, %v2239
      %v2335 = vadd.f32 %v2057, %v2242
      %v2336 = vadd.f32 %v2058, %v2245
      %v2337 = vadd.f32 %v2059, %v2248
      %v2338 = vadd.f32 %v2060, %v2251
      %v2339 = vadd.f32 %v2061, %v2254
      %v2340 = vadd.f32 %v2062, %v2257
      %v2341 = vadd.f32 %v2063, %v2260
      %v2342 = vadd.f32 %v2064, %v2263
      %v2343 = vadd.f32 %v2065, %v2266
      %v2344 = vadd.f32 %v2066, %v2269
      %v2345 = vadd.f32 %v2067, %v2272
      %v2346 = vadd.f32 %v2068, %v2275
      %v2347 = vadd.f32 %v2069, %v2278
      %v2348 = vadd.f32 %v2070, %v2281
      %v2349 = vadd.f32 %v2071, %v2284
      %v2350 = vadd.f32 %v2072, %v2287
      %v2351 = vadd.f32 %v2073, %v2290
      %v2352 = vadd.f32 %v2074, %v2293
      %v2353 = vadd.f32 %v2075, %v2296
      %v2354 = vadd.f32 %v2076, %v2299
      %v2355 = vadd.f32 %v2077, %v2302
      %v2356 = vadd.f32 %v2078, %v2305
      %v2357 = vadd.f32 %v2079, %v2308
      %v2358 = vadd.f32 %v2080, %v2311
      %v2359 = vadd.f32 %v2081, %v2314
      %v2360 = vadd.f32 %v2082, %v2317
      %v2361 = vadd.f32 %v2083, %v2320
      %v2362 = vadd.f32 %v2084, %v2323
      %v2363 = vadd.f32 %v2085, %v2326
      %v2364 = vadd.f32 %v2086, %v2329
      %v2365 = vadd.f32 %v2087, %v2332
      %v2366 = vld [vmem:[%s1809 + $0x2] sm:$0xff]
      %v2367 = vld [vmem:[%s1809 + $0xa] sm:$0xff]
      %v2368 = vld [vmem:[%s1809 + $0x1a] sm:$0xff]
      %v2369 = vld [vmem:[%s1809 + $0x22] sm:$0xff]
      %v2370 = vld [vmem:[%s1809 + $0x32] sm:$0xff]
      %v2371 = vld [vmem:[%s1809 + $0x3a] sm:$0xff]
      %v2372 = vld [vmem:[%s1809 + $0x4a] sm:$0xff]
      %v2373 = vld [vmem:[%s1809 + $0x52] sm:$0xff]
      %v2374 = vld [vmem:[%s1809 + $0x62] sm:$0xff]
      %v2375 = vld [vmem:[%s1809 + $0x6a] sm:$0xff]
      %v2376 = vld [vmem:[%s1809 + $0x7a] sm:$0xff]
      %v2377 = vld [vmem:[%s1809 + $0x82] sm:$0xff]
      %v2378 = vld [vmem:[%s1809 + $0x92] sm:$0xff]
      %v2379 = vld [vmem:[%s1809 + $0x9a] sm:$0xff]
      %v2380 = vld [vmem:[%s1809 + $0xaa] sm:$0xff]
      %v2381 = vld [vmem:[%s1809 + $0xb2] sm:$0xff]
      %v2382 = vld [vmem:[%s1809 + $0xc2] sm:$0xff]
      %v2383 = vld [vmem:[%s1809 + $0xca] sm:$0xff]
      %v2384 = vld [vmem:[%s1809 + $0xda] sm:$0xff]
      %v2385 = vld [vmem:[%s1809 + $0xe2] sm:$0xff]
      %v2386 = vld [vmem:[%s1809 + $0xf2] sm:$0xff]
      %v2387 = vld [vmem:[%s1809 + $0xfa] sm:$0xff]
      %v2388 = vld [vmem:[%s1809 + $0x10a] sm:$0xff]
      %v2389 = vld [vmem:[%s1809 + $0x112] sm:$0xff]
      %v2390 = vld [vmem:[%s1809 + $0x122] sm:$0xff]
      %v2391 = vld [vmem:[%s1809 + $0x12a] sm:$0xff]
      %v2392 = vld [vmem:[%s1809 + $0x13a] sm:$0xff]
      %v2393 = vld [vmem:[%s1809 + $0x142] sm:$0xff]
      %v2394 = vld [vmem:[%s1809 + $0x152] sm:$0xff]
      %v2395 = vld [vmem:[%s1809 + $0x15a] sm:$0xff]
      %v2396 = vld [vmem:[%s1809 + $0x16a] sm:$0xff]
      %v2397 = vld [vmem:[%s1809 + $0x172] sm:$0xff]
      %s2398 = scalar_lea.vmem %s1, 32
      %v2399 = vld [vmem:[%s2398] sm:$0xf]
      %v2401 = vsel %vm266, %v2366, 0
      %v2404 = vsel %vm266, %v2367, 0
      %v2407 = vsel %vm266, %v2368, 0
      %v2410 = vsel %vm266, %v2369, 0
      %v2413 = vsel %vm266, %v2370, 0
      %v2416 = vsel %vm266, %v2371, 0
      %v2419 = vsel %vm266, %v2372, 0
      %v2422 = vsel %vm266, %v2373, 0
      %v2425 = vsel %vm266, %v2374, 0
      %v2428 = vsel %vm266, %v2375, 0
      %v2431 = vsel %vm266, %v2376, 0
      %v2434 = vsel %vm266, %v2377, 0
      %v2437 = vsel %vm266, %v2378, 0
      %v2440 = vsel %vm266, %v2379, 0
      %v2443 = vsel %vm266, %v2380, 0
      %v2446 = vsel %vm266, %v2381, 0
      %v2449 = vsel %vm266, %v2382, 0
      %v2452 = vsel %vm266, %v2383, 0
      %v2455 = vsel %vm266, %v2384, 0
      %v2458 = vsel %vm266, %v2385, 0
      %v2461 = vsel %vm266, %v2386, 0
      %v2464 = vsel %vm266, %v2387, 0
      %v2467 = vsel %vm266, %v2388, 0
      %v2470 = vsel %vm266, %v2389, 0
      %v2473 = vsel %vm266, %v2390, 0
      %v2476 = vsel %vm266, %v2391, 0
      %v2479 = vsel %vm266, %v2392, 0
      %v2482 = vsel %vm266, %v2393, 0
      %v2485 = vsel %vm266, %v2394, 0
      %v2488 = vsel %vm266, %v2395, 0
      %v2491 = vsel %vm266, %v2396, 0
      %v2494 = vsel %vm266, %v2397, 0
      %v2497 = vsel %vm363, %v2399, 0
      %2499 = vmatpush.msra.mxu0 0.0
      %2500 = vmatpush.msra.mxu0 0.0
      %2501 = vmatpush.msra.mxu0 0.0
      %2502 = vmatpush.msra.mxu0 0.0
      %2503 = vmatpush.msra.mxu0 0.0
      %2504 = vmatpush.msra.mxu0 0.0
      %2505 = vmatpush.msra.mxu0 0.0
      %2506 = vmatpush.msra.mxu0 0.0
      %2507 = vmatpush.msra.mxu0 0.0
      %2508 = vmatpush.msra.mxu0 0.0
      %2509 = vmatpush.msra.mxu0 0.0
      %2510 = vmatpush.msra.mxu0 0.0
      %2511 = vmatpush.msra.mxu0 0.0
      %2512 = vmatpush.msra.mxu0 0.0
      %2513 = vmatpush.msra.mxu0 0.0
      %2514 = vmatpush.msra.mxu0 %v2497
      %2515 = vmatmul.f32.gmra.mxu0 %v2401
      %v2516 = vpop.f32.mrf.mxu0
      %v2517 = vadd.f32 0.0, %v2516
      %2518 = vmatmul.f32.gmra.mxu0 %v2404
      %v2519 = vpop.f32.mrf.mxu0
      %v2520 = vadd.f32 0.0, %v2519
      %2521 = vmatmul.f32.gmra.mxu0 %v2407
      %v2522 = vpop.f32.mrf.mxu0
      %v2523 = vadd.f32 0.0, %v2522
      %2524 = vmatmul.f32.gmra.mxu0 %v2410
      %v2525 = vpop.f32.mrf.mxu0
      %v2526 = vadd.f32 0.0, %v2525
      %2527 = vmatmul.f32.gmra.mxu0 %v2413
      %v2528 = vpop.f32.mrf.mxu0
      %v2529 = vadd.f32 0.0, %v2528
      %2530 = vmatmul.f32.gmra.mxu0 %v2416
      %v2531 = vpop.f32.mrf.mxu0
      %v2532 = vadd.f32 0.0, %v2531
      %2533 = vmatmul.f32.gmra.mxu0 %v2419
      %v2534 = vpop.f32.mrf.mxu0
      %v2535 = vadd.f32 0.0, %v2534
      %2536 = vmatmul.f32.gmra.mxu0 %v2422
      %v2537 = vpop.f32.mrf.mxu0
      %v2538 = vadd.f32 0.0, %v2537
      %2539 = vmatmul.f32.gmra.mxu0 %v2425
      %v2540 = vpop.f32.mrf.mxu0
      %v2541 = vadd.f32 0.0, %v2540
      %2542 = vmatmul.f32.gmra.mxu0 %v2428
      %v2543 = vpop.f32.mrf.mxu0
      %v2544 = vadd.f32 0.0, %v2543
      %2545 = vmatmul.f32.gmra.mxu0 %v2431
      %v2546 = vpop.f32.mrf.mxu0
      %v2547 = vadd.f32 0.0, %v2546
      %2548 = vmatmul.f32.gmra.mxu0 %v2434
      %v2549 = vpop.f32.mrf.mxu0
      %v2550 = vadd.f32 0.0, %v2549
      %2551 = vmatmul.f32.gmra.mxu0 %v2437
      %v2552 = vpop.f32.mrf.mxu0
      %v2553 = vadd.f32 0.0, %v2552
      %2554 = vmatmul.f32.gmra.mxu0 %v2440
      %v2555 = vpop.f32.mrf.mxu0
      %v2556 = vadd.f32 0.0, %v2555
      %2557 = vmatmul.f32.gmra.mxu0 %v2443
      %v2558 = vpop.f32.mrf.mxu0
      %v2559 = vadd.f32 0.0, %v2558
      %2560 = vmatmul.f32.gmra.mxu0 %v2446
      %v2561 = vpop.f32.mrf.mxu0
      %v2562 = vadd.f32 0.0, %v2561
      %2563 = vmatmul.f32.gmra.mxu0 %v2449
      %v2564 = vpop.f32.mrf.mxu0
      %v2565 = vadd.f32 0.0, %v2564
      %2566 = vmatmul.f32.gmra.mxu0 %v2452
      %v2567 = vpop.f32.mrf.mxu0
      %v2568 = vadd.f32 0.0, %v2567
      %2569 = vmatmul.f32.gmra.mxu0 %v2455
      %v2570 = vpop.f32.mrf.mxu0
      %v2571 = vadd.f32 0.0, %v2570
      %2572 = vmatmul.f32.gmra.mxu0 %v2458
      %v2573 = vpop.f32.mrf.mxu0
      %v2574 = vadd.f32 0.0, %v2573
      %2575 = vmatmul.f32.gmra.mxu0 %v2461
      %v2576 = vpop.f32.mrf.mxu0
      %v2577 = vadd.f32 0.0, %v2576
      %2578 = vmatmul.f32.gmra.mxu0 %v2464
      %v2579 = vpop.f32.mrf.mxu0
      %v2580 = vadd.f32 0.0, %v2579
      %2581 = vmatmul.f32.gmra.mxu0 %v2467
      %v2582 = vpop.f32.mrf.mxu0
      %v2583 = vadd.f32 0.0, %v2582
      %2584 = vmatmul.f32.gmra.mxu0 %v2470
      %v2585 = vpop.f32.mrf.mxu0
      %v2586 = vadd.f32 0.0, %v2585
      %2587 = vmatmul.f32.gmra.mxu0 %v2473
      %v2588 = vpop.f32.mrf.mxu0
      %v2589 = vadd.f32 0.0, %v2588
      %2590 = vmatmul.f32.gmra.mxu0 %v2476
      %v2591 = vpop.f32.mrf.mxu0
      %v2592 = vadd.f32 0.0, %v2591
      %2593 = vmatmul.f32.gmra.mxu0 %v2479
      %v2594 = vpop.f32.mrf.mxu0
      %v2595 = vadd.f32 0.0, %v2594
      %2596 = vmatmul.f32.gmra.mxu0 %v2482
      %v2597 = vpop.f32.mrf.mxu0
      %v2598 = vadd.f32 0.0, %v2597
      %2599 = vmatmul.f32.gmra.mxu0 %v2485
      %v2600 = vpop.f32.mrf.mxu0
      %v2601 = vadd.f32 0.0, %v2600
      %2602 = vmatmul.f32.gmra.mxu0 %v2488
      %v2603 = vpop.f32.mrf.mxu0
      %v2604 = vadd.f32 0.0, %v2603
      %2605 = vmatmul.f32.gmra.mxu0 %v2491
      %v2606 = vpop.f32.mrf.mxu0
      %v2607 = vadd.f32 0.0, %v2606
      %2608 = vmatmul.f32.gmra.mxu0 %v2494
      %v2609 = vpop.f32.mrf.mxu0
      %v2610 = vadd.f32 0.0, %v2609
      %2611 = vdwg.mxu0
      %v2612 = vadd.f32 %v2334, %v2517
      %v2613 = vadd.f32 %v2335, %v2520
      %v2614 = vadd.f32 %v2336, %v2523
      %v2615 = vadd.f32 %v2337, %v2526
      %v2616 = vadd.f32 %v2338, %v2529
      %v2617 = vadd.f32 %v2339, %v2532
      %v2618 = vadd.f32 %v2340, %v2535
      %v2619 = vadd.f32 %v2341, %v2538
      %v2620 = vadd.f32 %v2342, %v2541
      %v2621 = vadd.f32 %v2343, %v2544
      %v2622 = vadd.f32 %v2344, %v2547
      %v2623 = vadd.f32 %v2345, %v2550
      %v2624 = vadd.f32 %v2346, %v2553
      %v2625 = vadd.f32 %v2347, %v2556
      %v2626 = vadd.f32 %v2348, %v2559
      %v2627 = vadd.f32 %v2349, %v2562
      %v2628 = vadd.f32 %v2350, %v2565
      %v2629 = vadd.f32 %v2351, %v2568
      %v2630 = vadd.f32 %v2352, %v2571
      %v2631 = vadd.f32 %v2353, %v2574
      %v2632 = vadd.f32 %v2354, %v2577
      %v2633 = vadd.f32 %v2355, %v2580
      %v2634 = vadd.f32 %v2356, %v2583
      %v2635 = vadd.f32 %v2357, %v2586
      %v2636 = vadd.f32 %v2358, %v2589
      %v2637 = vadd.f32 %v2359, %v2592
      %v2638 = vadd.f32 %v2360, %v2595
      %v2639 = vadd.f32 %v2361, %v2598
      %v2640 = vadd.f32 %v2362, %v2601
      %v2641 = vadd.f32 %v2363, %v2604
      %v2642 = vadd.f32 %v2364, %v2607
      %v2643 = vadd.f32 %v2365, %v2610
      %v2644 = vld [vmem:[%s2] sm:$0x1]
      %v2646 = vperm.slane %v2644, 0
      %v2648 = vadd.f32 %v2612, %v2646
      %v2649 = vadd.f32 %v2613, %v2646
      %v2650 = vadd.f32 %v2614, %v2646
      %v2651 = vadd.f32 %v2615, %v2646
      %v2652 = vadd.f32 %v2616, %v2646
      %v2653 = vadd.f32 %v2617, %v2646
      %v2654 = vadd.f32 %v2618, %v2646
      %v2655 = vadd.f32 %v2619, %v2646
      %v2656 = vadd.f32 %v2620, %v2646
      %v2657 = vadd.f32 %v2621, %v2646
      %v2658 = vadd.f32 %v2622, %v2646
      %v2659 = vadd.f32 %v2623, %v2646
      %v2660 = vadd.f32 %v2624, %v2646
      %v2661 = vadd.f32 %v2625, %v2646
      %v2662 = vadd.f32 %v2626, %v2646
      %v2663 = vadd.f32 %v2627, %v2646
      %v2664 = vadd.f32 %v2628, %v2646
      %v2665 = vadd.f32 %v2629, %v2646
      %v2666 = vadd.f32 %v2630, %v2646
      %v2667 = vadd.f32 %v2631, %v2646
      %v2668 = vadd.f32 %v2632, %v2646
      %v2669 = vadd.f32 %v2633, %v2646
      %v2670 = vadd.f32 %v2634, %v2646
      %v2671 = vadd.f32 %v2635, %v2646
      %v2672 = vadd.f32 %v2636, %v2646
      %v2673 = vadd.f32 %v2637, %v2646
      %v2674 = vadd.f32 %v2638, %v2646
      %v2675 = vadd.f32 %v2639, %v2646
      %v2676 = vadd.f32 %v2640, %v2646
      %v2677 = vadd.f32 %v2641, %v2646
      %v2678 = vadd.f32 %v2642, %v2646
      %v2679 = vadd.f32 %v2643, %v2646
      %v2680 = vmax.f32 %v2648, 0.0
      %v2681 = vmax.f32 %v2649, 0.0
      %v2682 = vmax.f32 %v2650, 0.0
      %v2683 = vmax.f32 %v2651, 0.0
      %v2684 = vmax.f32 %v2652, 0.0
      %v2685 = vmax.f32 %v2653, 0.0
      %v2686 = vmax.f32 %v2654, 0.0
      %v2687 = vmax.f32 %v2655, 0.0
      %v2688 = vmax.f32 %v2656, 0.0
      %v2689 = vmax.f32 %v2657, 0.0
      %v2690 = vmax.f32 %v2658, 0.0
      %v2691 = vmax.f32 %v2659, 0.0
      %v2692 = vmax.f32 %v2660, 0.0
      %v2693 = vmax.f32 %v2661, 0.0
      %v2694 = vmax.f32 %v2662, 0.0
      %v2695 = vmax.f32 %v2663, 0.0
      %v2696 = vmax.f32 %v2664, 0.0
      %v2697 = vmax.f32 %v2665, 0.0
      %v2698 = vmax.f32 %v2666, 0.0
      %v2699 = vmax.f32 %v2667, 0.0
      %v2700 = vmax.f32 %v2668, 0.0
      %v2701 = vmax.f32 %v2669, 0.0
      %v2702 = vmax.f32 %v2670, 0.0
      %v2703 = vmax.f32 %v2671, 0.0
      %v2704 = vmax.f32 %v2672, 0.0
      %v2705 = vmax.f32 %v2673, 0.0
      %v2706 = vmax.f32 %v2674, 0.0
      %v2707 = vmax.f32 %v2675, 0.0
      %v2708 = vmax.f32 %v2676, 0.0
      %v2709 = vmax.f32 %v2677, 0.0
      %v2710 = vmax.f32 %v2678, 0.0
      %v2711 = vmax.f32 %v2679, 0.0
      %2712 = vst [vmem:[%s194] sm:$0xff] %v2680
      %2713 = vst [vmem:[%s194 + $0x8] sm:$0xff] %v2681
      %2714 = vst [vmem:[%s194 + $0x10] sm:$0xff] %v2682
      %2715 = vst [vmem:[%s194 + $0x18] sm:$0xff] %v2683
      %2716 = vst [vmem:[%s194 + $0x20] sm:$0xff] %v2684
      %2717 = vst [vmem:[%s194 + $0x28] sm:$0xff] %v2685
      %2718 = vst [vmem:[%s194 + $0x30] sm:$0xff] %v2686
      %2719 = vst [vmem:[%s194 + $0x38] sm:$0xff] %v2687
      %2720 = vst [vmem:[%s194 + $0x40] sm:$0xff] %v2688
      %2721 = vst [vmem:[%s194 + $0x48] sm:$0xff] %v2689
      %2722 = vst [vmem:[%s194 + $0x50] sm:$0xff] %v2690
      %2723 = vst [vmem:[%s194 + $0x58] sm:$0xff] %v2691
      %2724 = vst [vmem:[%s194 + $0x60] sm:$0xff] %v2692
      %2725 = vst [vmem:[%s194 + $0x68] sm:$0xff] %v2693
      %2726 = vst [vmem:[%s194 + $0x70] sm:$0xff] %v2694
      %2727 = vst [vmem:[%s194 + $0x78] sm:$0xff] %v2695
      %2728 = vst [vmem:[%s194 + $0x80] sm:$0xff] %v2696
      %2729 = vst [vmem:[%s194 + $0x88] sm:$0xff] %v2697
      %2730 = vst [vmem:[%s194 + $0x90] sm:$0xff] %v2698
      %2731 = vst [vmem:[%s194 + $0x98] sm:$0xff] %v2699
      %2732 = vst [vmem:[%s194 + $0xa0] sm:$0xff] %v2700
      %2733 = vst [vmem:[%s194 + $0xa8] sm:$0xff] %v2701
      %2734 = vst [vmem:[%s194 + $0xb0] sm:$0xff] %v2702
      %2735 = vst [vmem:[%s194 + $0xb8] sm:$0xff] %v2703
      %2736 = vst [vmem:[%s194 + $0xc0] sm:$0xff] %v2704
      %2737 = vst [vmem:[%s194 + $0xc8] sm:$0xff] %v2705
      %2738 = vst [vmem:[%s194 + $0xd0] sm:$0xff] %v2706
      %2739 = vst [vmem:[%s194 + $0xd8] sm:$0xff] %v2707
      %2740 = vst [vmem:[%s194 + $0xe0] sm:$0xff] %v2708
      %2741 = vst [vmem:[%s194 + $0xe8] sm:$0xff] %v2709
      %2742 = vst [vmem:[%s194 + $0xf0] sm:$0xff] %v2710
      %2743 = vst [vmem:[%s194 + $0xf8] sm:$0xff] %v2711
      %s2744 = smul.u32 16, %s19
      %p2745 = scmp.lt.s32.totalorder %s18, 1
      %s2746 = scalar_select %p2745, %s18, 1
      %p2747 = scmp.lt.s32.totalorder %s2744, 15
      %s2748 = scalar_select %p2747, %s2744, 15
      %s2749 = smul.addr %s2748, 2
      %s2750 = smul.addr %s2746, 32
      %s2751 = sadd.s32 %s2749, %s2750
      %s2752 = smul.addr %s2751, 8
      %s2753 = scalar_lea.vmem %s3, %s2752
      // Predicated region
      $region33: #{basic_conv2d.1} parent=31 // pred_check
        %p2754 = pneg %p114
      $region34: #{basic_conv2d.1} parent=31 // pred_check_branch
        %2756 = sbr.rel (%p2754) target = $region36
      $region35: #{basic_conv2d.1} parent=31 // pred_region
        %s2757 = smul.u32 16, %s19
      $region36: #{basic_conv2d.1} parent=31 // pred_fallthru
        _
    $region32: #{basic_conv2d.1} parent=5 // pred_fallthru
      _
    %p2758 = scmp.le.s32.totalorder 2, %s9
    // Predicated region
    $region37: #{basic_conv2d.1} parent=5 // pred_check
      %p2759 = pneg %p2758
    $region38: #{basic_conv2d.1} parent=5 // pred_check_branch
      %2761 = sbr.rel (%p2759) target = $region40
    $region39: #{basic_conv2d.1} parent=5 // pred_region
      %s2762 = ssub.s32 %s9, 2
      // Predicated region
      $region41: #{basic_conv2d.1} parent=39 // pred_check
        %p2763 = pneg %p120
      $region42: #{basic_conv2d.1} parent=39 // pred_check_branch
        %2765 = sbr.rel (%p2763) target = $region44
      $region43: #{basic_conv2d.1} parent=39 // pred_region
        %s2766 = smul.u32 16, %s21
        %p2767 = scmp.lt.s32.totalorder %s20, 1
        %s2768 = scalar_select %p2767, %s20, 1
        %p2769 = scmp.lt.s32.totalorder %s2766, 15
        %s2770 = scalar_select %p2769, %s2766, 15
        %s2771 = smul.addr %s2770, 2
        %s2772 = smul.addr %s2768, 32
        %s2773 = sadd.s32 %s2771, %s2772
        %s2774 = smul.addr %s2773, 8
        %s2775 = scalar_lea.vmem %s3, %s2774
      $region44: #{basic_conv2d.1} parent=39 // pred_fallthru
        _
    $region40: #{basic_conv2d.1} parent=5 // pred_fallthru
      _
  $region6: #{basic_conv2d.1} parent=0 // loop_footer
    %s13 = sadd.s32 1, %s9
  $region7: #{basic_conv2d.1} parent=0 // loop_footer_branch
    %8 = sbr.rel target = $region3
  $region8: #{basic_conv2d.1} parent=0 // loop_exit
    _

</llo_original>
